<compile_context>
chip_gen: v7x
topology: tpu7x:2x2x1
jax: 0.10.0
libtpu: 0.0.40
codegen_flags: <defaults>
</compile_context>

<pallas_src>
import jax
import jax.numpy as jnp
from jax.experimental import pallas as pl
from jax.experimental.pallas import tpu as pltpu


def bow_log_softmax_kernel(x_ref, w_ref, b_ref, out_ref):
    """One (batch-tile, vocab-tile) grid step of log_softmax(x @ W^T + b)."""
    k = pl.program_id(1)  # vocab (contraction) tile index

    # Partial contraction over this vocab tile on the MXU:
    #   (tb, tv) bf16 @ (tv, L) bf16 -> (tb, L) f32
    partial = jnp.dot(x_ref[...], w_ref[...], preferred_element_type=jnp.float32)

    # The out block index is (i, 0) for every k, so out_ref is VMEM-resident
    # across the whole contraction: accumulate into it directly (no scratch).
    @pl.when(k == 0)
    def _init():
        out_ref[...] = partial

    @pl.when(k > 0)
    def _accumulate():
        out_ref[...] += partial

    @pl.when(k == pl.num_programs(1) - 1)
    def _finalize():
        logits = out_ref[...] + b_ref[...]                      # (tb, L) + (1, L)
        m = jnp.max(logits, axis=-1, keepdims=True)             # stable log-softmax
        shifted = logits - m
        lse = jnp.log(jnp.sum(jnp.exp(shifted), axis=-1, keepdims=True))
        out_ref[...] = shifted - lse


def prepare_bow_params(w, b):
    """One-time parameter prep (hoisted out of the per-call path).

    w: (L, V) torch nn.Linear layout, b: (L,).
    Returns (w_t, b2): pre-transposed bf16 weight (V, L) and f32 bias (1, L).
    """
    L, V = w.shape
    w_t = jnp.transpose(w).astype(jnp.bfloat16)   # (V, L): no in-kernel transpose
    b2 = b.reshape(1, L).astype(jnp.float32)
    return w_t, b2


def _choose_tiles(B, V):
    """Pick large tiles (per review): big batch tile but >=2 blocks on the
    parallel axis when possible (v7x megacore), vocab tile = full vocab unless
    the x tile would exceed ~4 MiB (then halve until it fits)."""
    if B >= 512:
        tb = 256
    elif B >= 128:
        tb = B // 2          # keep 2 parallel batch blocks for v7x's 2 TCs
    else:
        tb = B
    tv = V
    max_x_tile_bytes = 4 * 1024 * 1024
    while tb * tv * 2 > max_x_tile_bytes and tv % 2 == 0 and tv > 512:
        tv //= 2
    return tb, tv


def bow_classifier_forward(bow_vec, w_t, b2, *, tb=None, tv=None):
    """log_softmax(bow_vec @ W.T + b, axis=1) via a fused Pallas TPU kernel.

    bow_vec: (B, V) float. w_t: (V, L) bf16 (from prepare_bow_params).
    b2: (1, L) f32.
    """
    B, V = bow_vec.shape
    Vw, L = w_t.shape
    assert Vw == V, "weight vocab dim must match input"

    auto_tb, auto_tv = _choose_tiles(B, V)
    tb = auto_tb if tb is None else tb
    tv = auto_tv if tv is None else tv
    # TODO(synk): pad / mask with pl.cdiv for batch/vocab sizes that are not
    # multiples of the tile sizes.
    assert B % tb == 0 and V % tv == 0, "tile sizes must divide input shapes"

    # Only the per-call activation cast remains in the hot path.
    x_bf16 = bow_vec.astype(jnp.bfloat16)

    grid = (B // tb, V // tv)

    flops = 2 * B * V * L
    # x once + W re-streamed once per batch block + bias + f32 output.
    bytes_accessed = (
        B * V * 2
        + (B // tb) * V * L * 2
        + L * 4
        + B * L * 4
    )

    return pl.pallas_call(
        bow_log_softmax_kernel,
        out_shape=jax.ShapeDtypeStruct((B, L), jnp.float32),
        grid_spec=pltpu.PrefetchScalarGridSpec(
            num_scalar_prefetch=0,
            grid=grid,
            in_specs=[
                pl.BlockSpec((tb, tv), lambda i, k: (i, k)),   # bow_vec tile
                pl.BlockSpec((tv, L), lambda i, k: (k, 0)),    # W^T tile (streams V)
                pl.BlockSpec((1, L), lambda i, k: (0, 0)),     # bias (tiny, resident)
            ],
            # Same block for every k -> f32 output tile doubles as accumulator.
            out_specs=pl.BlockSpec((tb, L), lambda i, k: (i, 0)),
        ),
        compiler_params=pltpu.CompilerParams(
            # batch tiles independent -> parallel (2 TCs on v7x);
            # vocab tiles are a reduction -> arbitrary.
            dimension_semantics=("parallel", "arbitrary"),
            # Well within the v7x 64 MiB physical VMEM; plenty for these tiles.
            vmem_limit_bytes=48 * 1024 * 1024,
        ),
        cost_estimate=pl.CostEstimate(
            flops=flops,
            transcendentals=B * L,
            bytes_accessed=bytes_accessed,
        ),
    )(x_bf16, w_t, b2)


if __name__ == "__main__":
    # Small, deterministic synthetic setup consistent with the module:
    # bow_vec is (batch, vocab_size); linear maps vocab_size -> num_labels.
    NUM_LABELS = 16
    VOCAB = 2048
    BATCH = 128

    key = jax.random.PRNGKey(0)
    k_x, k_w, k_b = jax.random.split(key, 3)

    # Bag-of-words count vectors: small non-negative integers (exact in bf16).
    bow_vec = jax.random.randint(k_x, (BATCH, VOCAB), 0, 5).astype(jnp.float32)
    # nn.Linear default init: U(-1/sqrt(fan_in), 1/sqrt(fan_in)), fan_in = vocab.
    bound = 1.0 / (VOCAB ** 0.5)
    w = jax.random.uniform(k_w, (NUM_LABELS, VOCAB), jnp.float32, -bound, bound)
    b = jax.random.uniform(k_b, (NUM_LABELS,), jnp.float32, -bound, bound)

    # One-time parameter prep (cached outside the per-call path).
    w_t, b2 = prepare_bow_params(w, b)

    out = bow_classifier_forward(bow_vec, w_t, b2)
    jax.block_until_ready(out)

    # Pure-JAX f32 reference (kernel uses bf16 MXU inputs with f32 accumulation,
    # hence the loosened tolerance).
    logits_ref = bow_vec @ w.T + b
    ref = jax.nn.log_softmax(logits_ref, axis=-1)
    assert out.shape == (BATCH, NUM_LABELS)
    assert jnp.allclose(out, ref, atol=2e-2, rtol=2e-2), float(
        jnp.max(jnp.abs(out - ref))
    )

    print("KERNEL_OK")
</pallas_src>

<mosaic_0001>
module attributes {stable_mosaic.version = 11 : i64} {
  func.func @bow_log_softmax_kernel(%arg0: i32, %arg1: i32, %arg2: memref<64x2048xbf16, #tpu.memory_space<vmem>>, %arg3: memref<2048x16xbf16, #tpu.memory_space<vmem>>, %arg4: memref<1x16xf32, #tpu.memory_space<vmem>>, %arg5: memref<64x16xf32, #tpu.memory_space<vmem>>) attributes {dimension_semantics = [#tpu.dimension_semantics<parallel>, #tpu.dimension_semantics<arbitrary>], iteration_bounds = array<i64: 2, 1>, scalar_prefetch = 0 : i64, scratch_operands = 0 : i64, tpu.core_type = #tpu.core_type<tc>, window_params = [{transform_indices = @transform_0, window_bounds = array<i64: 64, 2048>}, {transform_indices = @transform_1, window_bounds = array<i64: 2048, 16>}, {pipeline_mode = #tpu.pipeline_mode<synchronous>, transform_indices = @transform_2, window_bounds = array<i64: 1, 16>}, {transform_indices = @transform_3, window_bounds = array<i64: 64, 16>}]} {
    %c0 = arith.constant 0 : index
    %c0_0 = arith.constant 0 : index
    %0 = vector.load %arg2[%c0, %c0_0] : memref<64x2048xbf16, #tpu.memory_space<vmem>>, vector<64x2048xbf16>
    %c0_1 = arith.constant 0 : index
    %c0_2 = arith.constant 0 : index
    %1 = vector.load %arg3[%c0_1, %c0_2] : memref<2048x16xbf16, #tpu.memory_space<vmem>>, vector<2048x16xbf16>
    %cst = arith.constant dense<0.000000e+00> : vector<64x16xf32>
    %2 = tpu.matmul %0, %1, %cst {dimension_numbers = #tpu.dot_dimension_numbers<[1], [0], [0], [1], [0, 0, 1, 1], [], []>} : vector<64x2048xbf16>, vector<2048x16xbf16>, vector<64x16xf32> -> vector<64x16xf32>
    %c0_i32 = arith.constant 0 : i32
    %3 = arith.cmpi eq, %arg1, %c0_i32 : i32
    %4 = arith.extui %3 : i1 to i32
    %c0_i32_3 = arith.constant 0 : i32
    %5 = arith.cmpi ne, %4, %c0_i32_3 : i32
    scf.if %5 {
      %c0_8 = arith.constant 0 : index
      %c0_9 = arith.constant 0 : index
      %12 = vector.load %arg5[%c0_8, %c0_9] : memref<64x16xf32, #tpu.memory_space<vmem>>, vector<64x16xf32>
      tpu.vector_store %arg5[%c0_8, %c0_9], %2 {strides = array<i32>} : memref<64x16xf32, #tpu.memory_space<vmem>>, vector<64x16xf32>,
    } else {
    }
    %c0_i32_4 = arith.constant 0 : i32
    %6 = arith.cmpi sgt, %arg1, %c0_i32_4 : i32
    %7 = arith.extui %6 : i1 to i32
    %c0_i32_5 = arith.constant 0 : i32
    %8 = arith.cmpi ne, %7, %c0_i32_5 : i32
    scf.if %8 {
      %c0_8 = arith.constant 0 : index
      %c0_9 = arith.constant 0 : index
      %12 = vector.load %arg5[%c0_8, %c0_9] : memref<64x16xf32, #tpu.memory_space<vmem>>, vector<64x16xf32>
      %13 = arith.addf %12, %2 : vector<64x16xf32>
      %c0_10 = arith.constant 0 : index
      %c0_11 = arith.constant 0 : index
      %14 = vector.load %arg5[%c0_10, %c0_11] : memref<64x16xf32, #tpu.memory_space<vmem>>, vector<64x16xf32>
      tpu.vector_store %arg5[%c0_10, %c0_11], %13 {strides = array<i32>} : memref<64x16xf32, #tpu.memory_space<vmem>>, vector<64x16xf32>,
    } else {
    }
    %c0_i32_6 = arith.constant 0 : i32
    %9 = arith.cmpi eq, %arg1, %c0_i32_6 : i32
    %10 = arith.extui %9 : i1 to i32
    %c0_i32_7 = arith.constant 0 : i32
    %11 = arith.cmpi ne, %10, %c0_i32_7 : i32
    scf.if %11 {
      %c0_8 = arith.constant 0 : index
      %c0_9 = arith.constant 0 : index
      %12 = vector.load %arg5[%c0_8, %c0_9] : memref<64x16xf32, #tpu.memory_space<vmem>>, vector<64x16xf32>
      %c0_10 = arith.constant 0 : index
      %c0_11 = arith.constant 0 : index
      %13 = vector.load %arg4[%c0_10, %c0_11] : memref<1x16xf32, #tpu.memory_space<vmem>>, vector<1x16xf32>
      %14 = vector.broadcast %13 : vector<1x16xf32> to vector<64x16xf32>
      %15 = arith.addf %12, %14 : vector<64x16xf32>
      %cst_12 = arith.constant dense<0xFF800000> : vector<64xf32>
      %16 = vector.multi_reduction <maximumf>, %15, %cst_12 [1] : vector<64x16xf32> to vector<64xf32>
      %17 = vector.shape_cast %16 : vector<64xf32> to vector<64x1xf32>
      %18 = vector.broadcast %17 : vector<64x1xf32> to vector<64x16xf32>
      %19 = arith.subf %15, %18 : vector<64x16xf32>
      %20 = math.exp %19 : vector<64x16xf32>
      %cst_13 = arith.constant dense<0.000000e+00> : vector<64xf32>
      %21 = vector.multi_reduction <add>, %20, %cst_13 [1] : vector<64x16xf32> to vector<64xf32>
      %22 = vector.shape_cast %21 : vector<64xf32> to vector<64x1xf32>
      %23 = math.log %22 : vector<64x1xf32>
      %24 = vector.broadcast %23 : vector<64x1xf32> to vector<64x16xf32>
      %25 = arith.subf %19, %24 : vector<64x16xf32>
      %c0_14 = arith.constant 0 : index
      %c0_15 = arith.constant 0 : index
      %26 = vector.load %arg5[%c0_14, %c0_15] : memref<64x16xf32, #tpu.memory_space<vmem>>, vector<64x16xf32>
      tpu.vector_store %arg5[%c0_14, %c0_15], %25 {strides = array<i32>} : memref<64x16xf32, #tpu.memory_space<vmem>>, vector<64x16xf32>,
    } else {
    }
    return
  }
  func.func @transform_0(%arg0: i32, %arg1: i32) -> (i32, i32) {
    %c0_i32 = arith.constant 0 : i32
    return %arg0, %arg1 : i32, i32
  }
  func.func @transform_1(%arg0: i32, %arg1: i32) -> (i32, i32) {
    %c0_i32 = arith.constant 0 : i32
    %c0_i32_0 = arith.constant 0 : i32
    return %arg1, %c0_i32 : i32, i32
  }
  func.func @transform_2(%arg0: i32, %arg1: i32) -> (i32, i32) {
    %c0_i32 = arith.constant 0 : i32
    %c0_i32_0 = arith.constant 0 : i32
    %c0_i32_1 = arith.constant 0 : i32
    return %c0_i32, %c0_i32_0 : i32, i32
  }
  func.func @transform_3(%arg0: i32, %arg1: i32) -> (i32, i32) {
    %c0_i32 = arith.constant 0 : i32
    %c0_i32_0 = arith.constant 0 : i32
    return %arg0, %c0_i32 : i32, i32
  }
}

</mosaic_0001>

<llo_original>
// kernel: tpu_custom_call.1
$region0: #{tpu_custom_call.1}
  #allocation0 [shape = 'u32[]', space=smem, size = 0x4, offset = 0x4, fixed_abs, tag = 'smem constant byte address 0x4 - core index']
  #allocation1 [shape = 'u32[144,128]{1,0:T(1,128)}', space=vmem, size = 0x12000, scoped, tag = 'internal scratch']
  %s0 = inlined_call_operand.vmem [shape: bf16[128,2048], index: 0, kind: input, shape index: {}]
  %s1 = inlined_call_operand.vmem [shape: bf16[2048,16], index: 1, kind: input, shape index: {}]
  %s2 = inlined_call_operand.vmem [shape: f32[1,16], index: 2, kind: input, shape index: {}]
  %s3 = inlined_call_operand.vmem [shape: f32[128,16], index: 3, kind: output, shape index: {}]
  %s4 = sld [smem:[#allocation0]]
  $region57: #{tpu_custom_call.1} parent=0
    _
  %s6 = ssub.s32 1, %s4
  %s7 = scalar_select 0, %s6, %s4
  loop: start=0, step=1, limit=4
  $region2: #{tpu_custom_call.1} parent=0 // loop_pre_header
    _
  $region3: #{tpu_custom_call.1} parent=0 // loop_header
    %s9 = sphi 0, %s13
    %p10 = scmp.ge.s32.totalorder %s9, 4
    %s16 = sphi 0, %s28
    %s17 = sphi 0, %s24
    %s18 = sphi 0, %s16
    %s19 = sphi 0, %s17
    %s20 = sphi 0, %s18
    %s21 = sphi 0, %s19
    %s33 = sphi 0, %s35
    %s36 = sphi 0, %s33
    %s37 = sphi 0, %s36
    %s53 = sphi 0, %s37
    %s59 = sphi 0, %s61
    %s62 = sphi 0, %s59
    %s63 = sphi 0, %s62
    %s79 = sphi 0, %s63
    %s83 = sphi 0, %s83
    %s85 = sphi 0, %s83
    %s86 = sphi 0, %s85
    %s100 = sphi 0, %s86
    %s106 = sphi 0, %s108
    %s109 = sphi 0, %s106
    %s110 = sphi 0, %s109
    %s126 = sphi 0, %s110
  $region4: #{tpu_custom_call.1} parent=0 // loop_header_branch
    %12 = sbr.rel (%p10) target = $region8
  $region5: #{tpu_custom_call.1} parent=0 // loop_body
    %s14 = ssub.s32 %s9, 1
    %s15 = ssub.s32 %s9, 2
    %s22 = sadd.s32 1, %s17
    %p23 = scmp.ge.s32.totalorder %s22, 1
    %s24 = scalar_select %p23, 0, %s22
    %s25 = sadd.s32 1, %s16
    %s26 = scalar_select %p23, %s25, %s16
    %p27 = scmp.ge.s32.totalorder %s26, 2
    %s28 = scalar_select %p27, 0, %s26
    %s29 = ssub.s32 %s16, %s28
    %s30 = ssub.s32 %s17, %s24
    %s31 = sor.u32 %s29, %s30
    %p32 = scmp.eq.s32.totalorder %s31, 0
    %s34 = sadd.s32 %s33, 1
    %s35 = scalar_select %p32, %s33, %s34
    %p38 = pneg %p32
    %p39 = scmp.eq.s32.totalorder %s9, 1
    %p40 = por %p38, %p39
    %p41 = scmp.ne.s32.totalorder %s33, %s36
    %p42 = scmp.eq.s32.totalorder %s9, 0
    %p43 = por %p41, %p42
    %p44 = scmp.ne.s32.totalorder %s33, %s36
    %p45 = scmp.eq.s32.totalorder %s14, 1
    %p46 = por %p44, %p45
    %p47 = scmp.ne.s32.totalorder %s36, %s37
    %p48 = scmp.eq.s32.totalorder %s14, 0
    %p49 = por %p47, %p48
    %p50 = scmp.ne.s32.totalorder %s36, %s37
    %p51 = scmp.eq.s32.totalorder %s15, 1
    %p52 = por %p50, %p51
    %p54 = scmp.ne.s32.totalorder %s37, %s53
    %p55 = scmp.eq.s32.totalorder %s15, 0
    %p56 = por %p54, %p55
    %s57 = ssub.s32 %s17, %s24
    %p58 = scmp.eq.s32.totalorder %s57, 0
    %s60 = sadd.s32 %s59, 1
    %s61 = scalar_select %p58, %s59, %s60
    %p64 = pneg %p58
    %p65 = scmp.eq.s32.totalorder %s9, 1
    %p66 = por %p64, %p65
    %p67 = scmp.ne.s32.totalorder %s59, %s62
    %p68 = scmp.eq.s32.totalorder %s9, 0
    %p69 = por %p67, %p68
    %p70 = scmp.ne.s32.totalorder %s59, %s62
    %p71 = scmp.eq.s32.totalorder %s14, 1
    %p72 = por %p70, %p71
    %p73 = scmp.ne.s32.totalorder %s62, %s63
    %p74 = scmp.eq.s32.totalorder %s14, 0
    %p75 = por %p73, %p74
    %p76 = scmp.ne.s32.totalorder %s62, %s63
    %p77 = scmp.eq.s32.totalorder %s15, 1
    %p78 = por %p76, %p77
    %p80 = scmp.ne.s32.totalorder %s63, %s79
    %p81 = scmp.eq.s32.totalorder %s15, 0
    %p82 = por %p80, %p81
    %s84 = sadd.s32 %s83, 1
    %p87 = scmp.eq.s32.totalorder %s9, 1
    %p88 = scmp.ne.s32.totalorder %s83, %s85
    %p89 = scmp.eq.s32.totalorder %s9, 0
    %p90 = por %p88, %p89
    %p91 = scmp.ne.s32.totalorder %s83, %s85
    %p92 = scmp.eq.s32.totalorder %s14, 1
    %p93 = por %p91, %p92
    %p94 = scmp.ne.s32.totalorder %s85, %s86
    %p95 = scmp.eq.s32.totalorder %s14, 0
    %p96 = por %p94, %p95
    %p97 = scmp.ne.s32.totalorder %s85, %s86
    %p98 = scmp.eq.s32.totalorder %s15, 1
    %p99 = por %p97, %p98
    %p101 = scmp.ne.s32.totalorder %s86, %s100
    %p102 = scmp.eq.s32.totalorder %s15, 0
    %p103 = por %p101, %p102
    %s104 = ssub.s32 %s16, %s28
    %p105 = scmp.eq.s32.totalorder %s104, 0
    %s107 = sadd.s32 %s106, 1
    %s108 = scalar_select %p105, %s106, %s107
    %p111 = pneg %p105
    %p112 = scmp.eq.s32.totalorder %s9, 1
    %p113 = por %p111, %p112
    %p114 = scmp.ne.s32.totalorder %s106, %s109
    %p115 = scmp.eq.s32.totalorder %s9, 0
    %p116 = por %p114, %p115
    %p117 = scmp.ne.s32.totalorder %s106, %s109
    %p118 = scmp.eq.s32.totalorder %s14, 1
    %p119 = por %p117, %p118
    %p120 = scmp.ne.s32.totalorder %s109, %s110
    %p121 = scmp.eq.s32.totalorder %s14, 0
    %p122 = por %p120, %p121
    %p123 = scmp.ne.s32.totalorder %s109, %s110
    %p124 = scmp.eq.s32.totalorder %s15, 1
    %p125 = por %p123, %p124
    %p127 = scmp.ne.s32.totalorder %s110, %s126
    %p128 = scmp.eq.s32.totalorder %s15, 0
    %p129 = por %p127, %p128
    %p130 = scmp.le.s32.totalorder 1, %s9
    %p131 = scmp.lt.s32.totalorder %s9, 3
    %p132 = pnand %p130, %p131
    %p133 = pneg %p132
    // Predicated region
    $region9: #{tpu_custom_call.1} parent=5 // pred_check
      _
    $region10: #{tpu_custom_call.1} parent=5 // pred_check_branch
      %135 = sbr.rel (%p132) target = $region12
    $region11: #{tpu_custom_call.1} parent=5 // pred_region
      %s136 = ssub.s32 %s9, 1
      // Predicated region
      $region13: #{tpu_custom_call.1} parent=11 // pred_check
        %p137 = pneg %p75
      $region14: #{tpu_custom_call.1} parent=11 // pred_check_branch
        %139 = sbr.rel (%p137) target = $region16
      $region15: #{tpu_custom_call.1} parent=11 // pred_region
        %s140 = smul.u32 256, %s19
        %p141 = scmp.lt.s32.totalorder %s140, 255
        %s142 = scalar_select %p141, %s140, 255
        %s143 = smul.addr %s142, 4
        %s144 = scalar_lea.vmem %s1, %s143
        %s145 = smul.u32 256, %s19
      $region16: #{tpu_custom_call.1} parent=11 // pred_fallthru
        _
      // Predicated region
      $region17: #{tpu_custom_call.1} parent=11 // pred_check
        %p146 = pneg %p96
      $region18: #{tpu_custom_call.1} parent=11 // pred_check_branch
        %148 = sbr.rel (%p146) target = $region20
      $region19: #{tpu_custom_call.1} parent=11 // pred_region
        _
      $region20: #{tpu_custom_call.1} parent=11 // pred_fallthru
        _
    $region12: #{tpu_custom_call.1} parent=5 // pred_fallthru
      _
    %p149 = scmp.lt.s32.totalorder %s9, 2
    // Predicated region
    $region21: #{tpu_custom_call.1} parent=5 // pred_check
      %p150 = pneg %p149
    $region22: #{tpu_custom_call.1} parent=5 // pred_check_branch
      %152 = sbr.rel (%p150) target = $region24
    $region23: #{tpu_custom_call.1} parent=5 // pred_region
      // Predicated region
      $region25: #{tpu_custom_call.1} parent=23 // pred_check
        %p153 = pneg %p43
      $region26: #{tpu_custom_call.1} parent=23 // pred_check_branch
        %155 = sbr.rel (%p153) target = $region28
      $region27: #{tpu_custom_call.1} parent=23 // pred_region
        %s156 = smul.u32 8, %s16
        %s157 = smul.u32 16, %s17
        %p158 = scmp.lt.s32.totalorder %s156, 15
        %s159 = scalar_select %p158, %s156, 15
        %p160 = scmp.lt.s32.totalorder %s157, 15
        %s161 = scalar_select %p160, %s157, 15
        %s162 = smul.addr %s159, 16
        %s163 = sadd.s32 %s161, %s162
        %s164 = smul.addr %s163, 4
        %s165 = scalar_lea.vmem %s0, %s164
        %s166 = smul.u32 8, %s16
        %s167 = smul.u32 16, %s17
      $region28: #{tpu_custom_call.1} parent=23 // pred_fallthru
        _
    $region24: #{tpu_custom_call.1} parent=5 // pred_fallthru
      _
    %p168 = scmp.le.s32.totalorder 1, %s9
    %p169 = scmp.lt.s32.totalorder %s9, 3
    %p170 = pnand %p168, %p169
    %p171 = pneg %p170
    // Predicated region
    $region29: #{tpu_custom_call.1} parent=5 // pred_check
      _
    $region30: #{tpu_custom_call.1} parent=5 // pred_check_branch
      %173 = sbr.rel (%p170) target = $region32
    $region31: #{tpu_custom_call.1} parent=5 // pred_region
      %s174 = ssub.s32 %s9, 1
      %s175 = smul.u32 8, %s18
      %s176 = smul.u32 16, %s19
      %p177 = scmp.lt.s32.totalorder %s175, 15
      %s178 = scalar_select %p177, %s175, 15
      %p179 = scmp.lt.s32.totalorder %s176, 15
      %s180 = scalar_select %p179, %s176, 15
      %s181 = smul.addr %s178, 16
      %s182 = sadd.s32 %s180, %s181
      %s183 = smul.addr %s182, 4
      %s184 = scalar_lea.vmem %s0, %s183
      %p185 = pneg %p49
      %p186 = pneg %p46
      %s187 = smul.u32 256, %s19
      %p188 = scmp.lt.s32.totalorder %s187, 255
      %s189 = scalar_select %p188, %s187, 255
      %s190 = smul.addr %s189, 4
      %s191 = scalar_lea.vmem %s1, %s190
      %p192 = pneg %p75
      %p193 = pneg %p72
      %p194 = pneg %p96
      %p195 = pneg %p93
      %p196 = pneg %p122
      %p197 = pneg %p119
      %s198 = smul.u32 8, %s18
      %p199 = scmp.lt.s32.totalorder %s198, 15
      %s200 = scalar_select %p199, %s198, 15
      %s201 = smul.addr %s200, 8
      %s202 = scalar_lea.vmem %s3, %s201
      %s203 = smul.u32 8, %s18
      %s204 = smul.u32 16, %s19
      %p205 = scmp.lt.s32.totalorder %s203, 15
      %s206 = scalar_select %p205, %s203, 15
      %p207 = scmp.lt.s32.totalorder %s204, 15
      %s208 = scalar_select %p207, %s204, 15
      %s209 = smul.addr %s206, 16
      %s210 = sadd.s32 %s208, %s209
      %s211 = smul.addr %s210, 4
      %s212 = scalar_lea.vmem %s0, %s211
      %s213 = smul.u32 8, %s18
      %s214 = smul.u32 16, %s19
      %s215 = smul.u32 256, %s19
      %p216 = scmp.lt.s32.totalorder %s215, 255
      %s217 = scalar_select %p216, %s215, 255
      %s218 = smul.addr %s217, 4
      %s219 = scalar_lea.vmem %s1, %s218
      %s220 = smul.u32 256, %s19
      %s221 = smul.u32 8, %s18
      %p222 = scmp.lt.s32.totalorder %s221, 15
      %s223 = scalar_select %p222, %s221, 15
      %s224 = smul.addr %s223, 8
      %s225 = scalar_lea.vmem %s3, %s224
      %s226 = smul.u32 8, %s18
      %v228 = vld [vmem:[%s212] sm:$0xff]
      %v229 = vld [vmem:[%s212 + $0x8] sm:$0xff]
      %v230 = vld [vmem:[%s212 + $0x10] sm:$0xff]
      %v231 = vld [vmem:[%s212 + $0x18] sm:$0xff]
      %v232 = vld [vmem:[%s212 + $0x20] sm:$0xff]
      %v233 = vld [vmem:[%s212 + $0x28] sm:$0xff]
      %v234 = vld [vmem:[%s212 + $0x30] sm:$0xff]
      %v235 = vld [vmem:[%s212 + $0x38] sm:$0xff]
      %v236 = vld [vmem:[%s212 + $0x40] sm:$0xff]
      %v237 = vld [vmem:[%s212 + $0x48] sm:$0xff]
      %v238 = vld [vmem:[%s212 + $0x50] sm:$0xff]
      %v239 = vld [vmem:[%s212 + $0x58] sm:$0xff]
      %v240 = vld [vmem:[%s212 + $0x60] sm:$0xff]
      %v241 = vld [vmem:[%s212 + $0x68] sm:$0xff]
      %v242 = vld [vmem:[%s212 + $0x70] sm:$0xff]
      %v243 = vld [vmem:[%s212 + $0x78] sm:$0xff]
      %v244 = vld [vmem:[%s212 + $0x80] sm:$0xff]
      %v245 = vld [vmem:[%s212 + $0x88] sm:$0xff]
      %v246 = vld [vmem:[%s212 + $0x90] sm:$0xff]
      %v247 = vld [vmem:[%s212 + $0x98] sm:$0xff]
      %v248 = vld [vmem:[%s212 + $0xa0] sm:$0xff]
      %v249 = vld [vmem:[%s212 + $0xa8] sm:$0xff]
      %v250 = vld [vmem:[%s212 + $0xb0] sm:$0xff]
      %v251 = vld [vmem:[%s212 + $0xb8] sm:$0xff]
      %v252 = vld [vmem:[%s212 + $0xc0] sm:$0xff]
      %v253 = vld [vmem:[%s212 + $0xc8] sm:$0xff]
      %v254 = vld [vmem:[%s212 + $0xd0] sm:$0xff]
      %v255 = vld [vmem:[%s212 + $0xd8] sm:$0xff]
      %v256 = vld [vmem:[%s212 + $0xe0] sm:$0xff]
      %v257 = vld [vmem:[%s212 + $0xe8] sm:$0xff]
      %v258 = vld [vmem:[%s212 + $0xf0] sm:$0xff]
      %v259 = vld [vmem:[%s212 + $0xf8] sm:$0xff]
      %v260 = vld [vmem:[%s212 + $0x100] sm:$0xff]
      %v261 = vld [vmem:[%s212 + $0x108] sm:$0xff]
      %v262 = vld [vmem:[%s212 + $0x110] sm:$0xff]
      %v263 = vld [vmem:[%s212 + $0x118] sm:$0xff]
      %v264 = vld [vmem:[%s212 + $0x120] sm:$0xff]
      %v265 = vld [vmem:[%s212 + $0x128] sm:$0xff]
      %v266 = vld [vmem:[%s212 + $0x130] sm:$0xff]
      %v267 = vld [vmem:[%s212 + $0x138] sm:$0xff]
      %v268 = vld [vmem:[%s212 + $0x140] sm:$0xff]
      %v269 = vld [vmem:[%s212 + $0x148] sm:$0xff]
      %v270 = vld [vmem:[%s212 + $0x150] sm:$0xff]
      %v271 = vld [vmem:[%s212 + $0x158] sm:$0xff]
      %v272 = vld [vmem:[%s212 + $0x160] sm:$0xff]
      %v273 = vld [vmem:[%s212 + $0x168] sm:$0xff]
      %v274 = vld [vmem:[%s212 + $0x170] sm:$0xff]
      %v275 = vld [vmem:[%s212 + $0x178] sm:$0xff]
      %v276 = vld [vmem:[%s212 + $0x180] sm:$0xff]
      %v277 = vld [vmem:[%s212 + $0x188] sm:$0xff]
      %v278 = vld [vmem:[%s212 + $0x190] sm:$0xff]
      %v279 = vld [vmem:[%s212 + $0x198] sm:$0xff]
      %v280 = vld [vmem:[%s212 + $0x1a0] sm:$0xff]
      %v281 = vld [vmem:[%s212 + $0x1a8] sm:$0xff]
      %v282 = vld [vmem:[%s212 + $0x1b0] sm:$0xff]
      %v283 = vld [vmem:[%s212 + $0x1b8] sm:$0xff]
      %v284 = vld [vmem:[%s212 + $0x1c0] sm:$0xff]
      %v285 = vld [vmem:[%s212 + $0x1c8] sm:$0xff]
      %v286 = vld [vmem:[%s212 + $0x1d0] sm:$0xff]
      %v287 = vld [vmem:[%s212 + $0x1d8] sm:$0xff]
      %v288 = vld [vmem:[%s212 + $0x1e0] sm:$0xff]
      %v289 = vld [vmem:[%s212 + $0x1e8] sm:$0xff]
      %v290 = vld [vmem:[%s212 + $0x1f0] sm:$0xff]
      %v291 = vld [vmem:[%s212 + $0x1f8] sm:$0xff]
      %v292 = vld [vmem:[%s219] sm:$0xf]
      %v293 = vld [vmem:[%s219 + $0x4] sm:$0xf]
      %v294 = vld [vmem:[%s219 + $0x8] sm:$0xf]
      %v295 = vld [vmem:[%s219 + $0xc] sm:$0xf]
      %v296 = vld [vmem:[%s219 + $0x10] sm:$0xf]
      %v297 = vld [vmem:[%s219 + $0x14] sm:$0xf]
      %v298 = vld [vmem:[%s219 + $0x18] sm:$0xf]
      %v299 = vld [vmem:[%s219 + $0x1c] sm:$0xf]
      %v300 = vld [vmem:[%s219 + $0x20] sm:$0xf]
      %v301 = vld [vmem:[%s219 + $0x24] sm:$0xf]
      %v302 = vld [vmem:[%s219 + $0x28] sm:$0xf]
      %v303 = vld [vmem:[%s219 + $0x2c] sm:$0xf]
      %v304 = vld [vmem:[%s219 + $0x30] sm:$0xf]
      %v305 = vld [vmem:[%s219 + $0x34] sm:$0xf]
      %v306 = vld [vmem:[%s219 + $0x38] sm:$0xf]
      %v307 = vld [vmem:[%s219 + $0x3c] sm:$0xf]
      %v308 = vld [vmem:[%s219 + $0x40] sm:$0xf]
      %v309 = vld [vmem:[%s219 + $0x44] sm:$0xf]
      %v310 = vld [vmem:[%s219 + $0x48] sm:$0xf]
      %v311 = vld [vmem:[%s219 + $0x4c] sm:$0xf]
      %v312 = vld [vmem:[%s219 + $0x50] sm:$0xf]
      %v313 = vld [vmem:[%s219 + $0x54] sm:$0xf]
      %v314 = vld [vmem:[%s219 + $0x58] sm:$0xf]
      %v315 = vld [vmem:[%s219 + $0x5c] sm:$0xf]
      %v316 = vld [vmem:[%s219 + $0x60] sm:$0xf]
      %v317 = vld [vmem:[%s219 + $0x64] sm:$0xf]
      %v318 = vld [vmem:[%s219 + $0x68] sm:$0xf]
      %v319 = vld [vmem:[%s219 + $0x6c] sm:$0xf]
      %v320 = vld [vmem:[%s219 + $0x70] sm:$0xf]
      %v321 = vld [vmem:[%s219 + $0x74] sm:$0xf]
      %v322 = vld [vmem:[%s219 + $0x78] sm:$0xf]
      %v323 = vld [vmem:[%s219 + $0x7c] sm:$0xf]
      %v324 = vld [vmem:[%s219 + $0x80] sm:$0xf]
      %v325 = vld [vmem:[%s219 + $0x84] sm:$0xf]
      %v326 = vld [vmem:[%s219 + $0x88] sm:$0xf]
      %v327 = vld [vmem:[%s219 + $0x8c] sm:$0xf]
      %v328 = vld [vmem:[%s219 + $0x90] sm:$0xf]
      %v329 = vld [vmem:[%s219 + $0x94] sm:$0xf]
      %v330 = vld [vmem:[%s219 + $0x98] sm:$0xf]
      %v331 = vld [vmem:[%s219 + $0x9c] sm:$0xf]
      %v332 = vld [vmem:[%s219 + $0xa0] sm:$0xf]
      %v333 = vld [vmem:[%s219 + $0xa4] sm:$0xf]
      %v334 = vld [vmem:[%s219 + $0xa8] sm:$0xf]
      %v335 = vld [vmem:[%s219 + $0xac] sm:$0xf]
      %v336 = vld [vmem:[%s219 + $0xb0] sm:$0xf]
      %v337 = vld [vmem:[%s219 + $0xb4] sm:$0xf]
      %v338 = vld [vmem:[%s219 + $0xb8] sm:$0xf]
      %v339 = vld [vmem:[%s219 + $0xbc] sm:$0xf]
      %v340 = vld [vmem:[%s219 + $0xc0] sm:$0xf]
      %v341 = vld [vmem:[%s219 + $0xc4] sm:$0xf]
      %v342 = vld [vmem:[%s219 + $0xc8] sm:$0xf]
      %v343 = vld [vmem:[%s219 + $0xcc] sm:$0xf]
      %v344 = vld [vmem:[%s219 + $0xd0] sm:$0xf]
      %v345 = vld [vmem:[%s219 + $0xd4] sm:$0xf]
      %v346 = vld [vmem:[%s219 + $0xd8] sm:$0xf]
      %v347 = vld [vmem:[%s219 + $0xdc] sm:$0xf]
      %v348 = vld [vmem:[%s219 + $0xe0] sm:$0xf]
      %v349 = vld [vmem:[%s219 + $0xe4] sm:$0xf]
      %v350 = vld [vmem:[%s219 + $0xe8] sm:$0xf]
      %v351 = vld [vmem:[%s219 + $0xec] sm:$0xf]
      %v352 = vld [vmem:[%s219 + $0xf0] sm:$0xf]
      %v353 = vld [vmem:[%s219 + $0xf4] sm:$0xf]
      %v354 = vld [vmem:[%s219 + $0xf8] sm:$0xf]
      %v355 = vld [vmem:[%s219 + $0xfc] sm:$0xf]
      %v356 = vld [vmem:[%s219 + $0x100] sm:$0xf]
      %v357 = vld [vmem:[%s219 + $0x104] sm:$0xf]
      %v358 = vld [vmem:[%s219 + $0x108] sm:$0xf]
      %v359 = vld [vmem:[%s219 + $0x10c] sm:$0xf]
      %v360 = vld [vmem:[%s219 + $0x110] sm:$0xf]
      %v361 = vld [vmem:[%s219 + $0x114] sm:$0xf]
      %v362 = vld [vmem:[%s219 + $0x118] sm:$0xf]
      %v363 = vld [vmem:[%s219 + $0x11c] sm:$0xf]
      %v364 = vld [vmem:[%s219 + $0x120] sm:$0xf]
      %v365 = vld [vmem:[%s219 + $0x124] sm:$0xf]
      %v366 = vld [vmem:[%s219 + $0x128] sm:$0xf]
      %v367 = vld [vmem:[%s219 + $0x12c] sm:$0xf]
      %v368 = vld [vmem:[%s219 + $0x130] sm:$0xf]
      %v369 = vld [vmem:[%s219 + $0x134] sm:$0xf]
      %v370 = vld [vmem:[%s219 + $0x138] sm:$0xf]
      %v371 = vld [vmem:[%s219 + $0x13c] sm:$0xf]
      %v372 = vld [vmem:[%s219 + $0x140] sm:$0xf]
      %v373 = vld [vmem:[%s219 + $0x144] sm:$0xf]
      %v374 = vld [vmem:[%s219 + $0x148] sm:$0xf]
      %v375 = vld [vmem:[%s219 + $0x14c] sm:$0xf]
      %v376 = vld [vmem:[%s219 + $0x150] sm:$0xf]
      %v377 = vld [vmem:[%s219 + $0x154] sm:$0xf]
      %v378 = vld [vmem:[%s219 + $0x158] sm:$0xf]
      %v379 = vld [vmem:[%s219 + $0x15c] sm:$0xf]
      %v380 = vld [vmem:[%s219 + $0x160] sm:$0xf]
      %v381 = vld [vmem:[%s219 + $0x164] sm:$0xf]
      %v382 = vld [vmem:[%s219 + $0x168] sm:$0xf]
      %v383 = vld [vmem:[%s219 + $0x16c] sm:$0xf]
      %v384 = vld [vmem:[%s219 + $0x170] sm:$0xf]
      %v385 = vld [vmem:[%s219 + $0x174] sm:$0xf]
      %v386 = vld [vmem:[%s219 + $0x178] sm:$0xf]
      %v387 = vld [vmem:[%s219 + $0x17c] sm:$0xf]
      %v388 = vld [vmem:[%s219 + $0x180] sm:$0xf]
      %v389 = vld [vmem:[%s219 + $0x184] sm:$0xf]
      %v390 = vld [vmem:[%s219 + $0x188] sm:$0xf]
      %v391 = vld [vmem:[%s219 + $0x18c] sm:$0xf]
      %v392 = vld [vmem:[%s219 + $0x190] sm:$0xf]
      %v393 = vld [vmem:[%s219 + $0x194] sm:$0xf]
      %v394 = vld [vmem:[%s219 + $0x198] sm:$0xf]
      %v395 = vld [vmem:[%s219 + $0x19c] sm:$0xf]
      %v396 = vld [vmem:[%s219 + $0x1a0] sm:$0xf]
      %v397 = vld [vmem:[%s219 + $0x1a4] sm:$0xf]
      %v398 = vld [vmem:[%s219 + $0x1a8] sm:$0xf]
      %v399 = vld [vmem:[%s219 + $0x1ac] sm:$0xf]
      %v400 = vld [vmem:[%s219 + $0x1b0] sm:$0xf]
      %v401 = vld [vmem:[%s219 + $0x1b4] sm:$0xf]
      %v402 = vld [vmem:[%s219 + $0x1b8] sm:$0xf]
      %v403 = vld [vmem:[%s219 + $0x1bc] sm:$0xf]
      %v404 = vld [vmem:[%s219 + $0x1c0] sm:$0xf]
      %v405 = vld [vmem:[%s219 + $0x1c4] sm:$0xf]
      %v406 = vld [vmem:[%s219 + $0x1c8] sm:$0xf]
      %v407 = vld [vmem:[%s219 + $0x1cc] sm:$0xf]
      %v408 = vld [vmem:[%s219 + $0x1d0] sm:$0xf]
      %v409 = vld [vmem:[%s219 + $0x1d4] sm:$0xf]
      %v410 = vld [vmem:[%s219 + $0x1d8] sm:$0xf]
      %v411 = vld [vmem:[%s219 + $0x1dc] sm:$0xf]
      %v412 = vld [vmem:[%s219 + $0x1e0] sm:$0xf]
      %v413 = vld [vmem:[%s219 + $0x1e4] sm:$0xf]
      %v414 = vld [vmem:[%s219 + $0x1e8] sm:$0xf]
      %v415 = vld [vmem:[%s219 + $0x1ec] sm:$0xf]
      %v416 = vld [vmem:[%s219 + $0x1f0] sm:$0xf]
      %v417 = vld [vmem:[%s219 + $0x1f4] sm:$0xf]
      %v418 = vld [vmem:[%s219 + $0x1f8] sm:$0xf]
      %v419 = vld [vmem:[%s219 + $0x1fc] sm:$0xf]
      %v420 = vld [vmem:[%s219 + $0x200] sm:$0xf]
      %v421 = vld [vmem:[%s219 + $0x204] sm:$0xf]
      %v422 = vld [vmem:[%s219 + $0x208] sm:$0xf]
      %v423 = vld [vmem:[%s219 + $0x20c] sm:$0xf]
      %v424 = vld [vmem:[%s219 + $0x210] sm:$0xf]
      %v425 = vld [vmem:[%s219 + $0x214] sm:$0xf]
      %v426 = vld [vmem:[%s219 + $0x218] sm:$0xf]
      %v427 = vld [vmem:[%s219 + $0x21c] sm:$0xf]
      %v428 = vld [vmem:[%s219 + $0x220] sm:$0xf]
      %v429 = vld [vmem:[%s219 + $0x224] sm:$0xf]
      %v430 = vld [vmem:[%s219 + $0x228] sm:$0xf]
      %v431 = vld [vmem:[%s219 + $0x22c] sm:$0xf]
      %v432 = vld [vmem:[%s219 + $0x230] sm:$0xf]
      %v433 = vld [vmem:[%s219 + $0x234] sm:$0xf]
      %v434 = vld [vmem:[%s219 + $0x238] sm:$0xf]
      %v435 = vld [vmem:[%s219 + $0x23c] sm:$0xf]
      %v436 = vld [vmem:[%s219 + $0x240] sm:$0xf]
      %v437 = vld [vmem:[%s219 + $0x244] sm:$0xf]
      %v438 = vld [vmem:[%s219 + $0x248] sm:$0xf]
      %v439 = vld [vmem:[%s219 + $0x24c] sm:$0xf]
      %v440 = vld [vmem:[%s219 + $0x250] sm:$0xf]
      %v441 = vld [vmem:[%s219 + $0x254] sm:$0xf]
      %v442 = vld [vmem:[%s219 + $0x258] sm:$0xf]
      %v443 = vld [vmem:[%s219 + $0x25c] sm:$0xf]
      %v444 = vld [vmem:[%s219 + $0x260] sm:$0xf]
      %v445 = vld [vmem:[%s219 + $0x264] sm:$0xf]
      %v446 = vld [vmem:[%s219 + $0x268] sm:$0xf]
      %v447 = vld [vmem:[%s219 + $0x26c] sm:$0xf]
      %v448 = vld [vmem:[%s219 + $0x270] sm:$0xf]
      %v449 = vld [vmem:[%s219 + $0x274] sm:$0xf]
      %v450 = vld [vmem:[%s219 + $0x278] sm:$0xf]
      %v451 = vld [vmem:[%s219 + $0x27c] sm:$0xf]
      %v452 = vld [vmem:[%s219 + $0x280] sm:$0xf]
      %v453 = vld [vmem:[%s219 + $0x284] sm:$0xf]
      %v454 = vld [vmem:[%s219 + $0x288] sm:$0xf]
      %v455 = vld [vmem:[%s219 + $0x28c] sm:$0xf]
      %v456 = vld [vmem:[%s219 + $0x290] sm:$0xf]
      %v457 = vld [vmem:[%s219 + $0x294] sm:$0xf]
      %v458 = vld [vmem:[%s219 + $0x298] sm:$0xf]
      %v459 = vld [vmem:[%s219 + $0x29c] sm:$0xf]
      %v460 = vld [vmem:[%s219 + $0x2a0] sm:$0xf]
      %v461 = vld [vmem:[%s219 + $0x2a4] sm:$0xf]
      %v462 = vld [vmem:[%s219 + $0x2a8] sm:$0xf]
      %v463 = vld [vmem:[%s219 + $0x2ac] sm:$0xf]
      %v464 = vld [vmem:[%s219 + $0x2b0] sm:$0xf]
      %v465 = vld [vmem:[%s219 + $0x2b4] sm:$0xf]
      %v466 = vld [vmem:[%s219 + $0x2b8] sm:$0xf]
      %v467 = vld [vmem:[%s219 + $0x2bc] sm:$0xf]
      %v468 = vld [vmem:[%s219 + $0x2c0] sm:$0xf]
      %v469 = vld [vmem:[%s219 + $0x2c4] sm:$0xf]
      %v470 = vld [vmem:[%s219 + $0x2c8] sm:$0xf]
      %v471 = vld [vmem:[%s219 + $0x2cc] sm:$0xf]
      %v472 = vld [vmem:[%s219 + $0x2d0] sm:$0xf]
      %v473 = vld [vmem:[%s219 + $0x2d4] sm:$0xf]
      %v474 = vld [vmem:[%s219 + $0x2d8] sm:$0xf]
      %v475 = vld [vmem:[%s219 + $0x2dc] sm:$0xf]
      %v476 = vld [vmem:[%s219 + $0x2e0] sm:$0xf]
      %v477 = vld [vmem:[%s219 + $0x2e4] sm:$0xf]
      %v478 = vld [vmem:[%s219 + $0x2e8] sm:$0xf]
      %v479 = vld [vmem:[%s219 + $0x2ec] sm:$0xf]
      %v480 = vld [vmem:[%s219 + $0x2f0] sm:$0xf]
      %v481 = vld [vmem:[%s219 + $0x2f4] sm:$0xf]
      %v482 = vld [vmem:[%s219 + $0x2f8] sm:$0xf]
      %v483 = vld [vmem:[%s219 + $0x2fc] sm:$0xf]
      %v484 = vld [vmem:[%s219 + $0x300] sm:$0xf]
      %v485 = vld [vmem:[%s219 + $0x304] sm:$0xf]
      %v486 = vld [vmem:[%s219 + $0x308] sm:$0xf]
      %v487 = vld [vmem:[%s219 + $0x30c] sm:$0xf]
      %v488 = vld [vmem:[%s219 + $0x310] sm:$0xf]
      %v489 = vld [vmem:[%s219 + $0x314] sm:$0xf]
      %v490 = vld [vmem:[%s219 + $0x318] sm:$0xf]
      %v491 = vld [vmem:[%s219 + $0x31c] sm:$0xf]
      %v492 = vld [vmem:[%s219 + $0x320] sm:$0xf]
      %v493 = vld [vmem:[%s219 + $0x324] sm:$0xf]
      %v494 = vld [vmem:[%s219 + $0x328] sm:$0xf]
      %v495 = vld [vmem:[%s219 + $0x32c] sm:$0xf]
      %v496 = vld [vmem:[%s219 + $0x330] sm:$0xf]
      %v497 = vld [vmem:[%s219 + $0x334] sm:$0xf]
      %v498 = vld [vmem:[%s219 + $0x338] sm:$0xf]
      %v499 = vld [vmem:[%s219 + $0x33c] sm:$0xf]
      %v500 = vld [vmem:[%s219 + $0x340] sm:$0xf]
      %v501 = vld [vmem:[%s219 + $0x344] sm:$0xf]
      %v502 = vld [vmem:[%s219 + $0x348] sm:$0xf]
      %v503 = vld [vmem:[%s219 + $0x34c] sm:$0xf]
      %v504 = vld [vmem:[%s219 + $0x350] sm:$0xf]
      %v505 = vld [vmem:[%s219 + $0x354] sm:$0xf]
      %v506 = vld [vmem:[%s219 + $0x358] sm:$0xf]
      %v507 = vld [vmem:[%s219 + $0x35c] sm:$0xf]
      %v508 = vld [vmem:[%s219 + $0x360] sm:$0xf]
      %v509 = vld [vmem:[%s219 + $0x364] sm:$0xf]
      %v510 = vld [vmem:[%s219 + $0x368] sm:$0xf]
      %v511 = vld [vmem:[%s219 + $0x36c] sm:$0xf]
      %v512 = vld [vmem:[%s219 + $0x370] sm:$0xf]
      %v513 = vld [vmem:[%s219 + $0x374] sm:$0xf]
      %v514 = vld [vmem:[%s219 + $0x378] sm:$0xf]
      %v515 = vld [vmem:[%s219 + $0x37c] sm:$0xf]
      %v516 = vld [vmem:[%s219 + $0x380] sm:$0xf]
      %v517 = vld [vmem:[%s219 + $0x384] sm:$0xf]
      %v518 = vld [vmem:[%s219 + $0x388] sm:$0xf]
      %v519 = vld [vmem:[%s219 + $0x38c] sm:$0xf]
      %v520 = vld [vmem:[%s219 + $0x390] sm:$0xf]
      %v521 = vld [vmem:[%s219 + $0x394] sm:$0xf]
      %v522 = vld [vmem:[%s219 + $0x398] sm:$0xf]
      %v523 = vld [vmem:[%s219 + $0x39c] sm:$0xf]
      %v524 = vld [vmem:[%s219 + $0x3a0] sm:$0xf]
      %v525 = vld [vmem:[%s219 + $0x3a4] sm:$0xf]
      %v526 = vld [vmem:[%s219 + $0x3a8] sm:$0xf]
      %v527 = vld [vmem:[%s219 + $0x3ac] sm:$0xf]
      %v528 = vld [vmem:[%s219 + $0x3b0] sm:$0xf]
      %v529 = vld [vmem:[%s219 + $0x3b4] sm:$0xf]
      %v530 = vld [vmem:[%s219 + $0x3b8] sm:$0xf]
      %v531 = vld [vmem:[%s219 + $0x3bc] sm:$0xf]
      %v532 = vld [vmem:[%s219 + $0x3c0] sm:$0xf]
      %v533 = vld [vmem:[%s219 + $0x3c4] sm:$0xf]
      %v534 = vld [vmem:[%s219 + $0x3c8] sm:$0xf]
      %v535 = vld [vmem:[%s219 + $0x3cc] sm:$0xf]
      %v536 = vld [vmem:[%s219 + $0x3d0] sm:$0xf]
      %v537 = vld [vmem:[%s219 + $0x3d4] sm:$0xf]
      %v538 = vld [vmem:[%s219 + $0x3d8] sm:$0xf]
      %v539 = vld [vmem:[%s219 + $0x3dc] sm:$0xf]
      %v540 = vld [vmem:[%s219 + $0x3e0] sm:$0xf]
      %v541 = vld [vmem:[%s219 + $0x3e4] sm:$0xf]
      %v542 = vld [vmem:[%s219 + $0x3e8] sm:$0xf]
      %v543 = vld [vmem:[%s219 + $0x3ec] sm:$0xf]
      %v544 = vld [vmem:[%s219 + $0x3f0] sm:$0xf]
      %v545 = vld [vmem:[%s219 + $0x3f4] sm:$0xf]
      %v546 = vld [vmem:[%s219 + $0x3f8] sm:$0xf]
      %v547 = vld [vmem:[%s219 + $0x3fc] sm:$0xf]
      %v612 = vunpack.c.l.b16 %v228
      %v613 = vunpack.c.h.b16 %v228
      %v614 = vunpack.c.l.b16 %v229
      %v615 = vunpack.c.h.b16 %v229
      %v616 = vunpack.c.l.b16 %v230
      %v617 = vunpack.c.h.b16 %v230
      %v618 = vunpack.c.l.b16 %v231
      %v619 = vunpack.c.h.b16 %v231
      %v620 = vunpack.c.l.b16 %v232
      %v621 = vunpack.c.h.b16 %v232
      %v622 = vunpack.c.l.b16 %v233
      %v623 = vunpack.c.h.b16 %v233
      %v624 = vunpack.c.l.b16 %v234
      %v625 = vunpack.c.h.b16 %v234
      %v626 = vunpack.c.l.b16 %v235
      %v627 = vunpack.c.h.b16 %v235
      %v628 = vunpack.c.l.b16 %v236
      %v629 = vunpack.c.h.b16 %v236
      %v630 = vunpack.c.l.b16 %v237
      %v631 = vunpack.c.h.b16 %v237
      %v632 = vunpack.c.l.b16 %v238
      %v633 = vunpack.c.h.b16 %v238
      %v634 = vunpack.c.l.b16 %v239
      %v635 = vunpack.c.h.b16 %v239
      %v636 = vunpack.c.l.b16 %v240
      %v637 = vunpack.c.h.b16 %v240
      %v638 = vunpack.c.l.b16 %v241
      %v639 = vunpack.c.h.b16 %v241
      %v640 = vunpack.c.l.b16 %v242
      %v641 = vunpack.c.h.b16 %v242
      %v642 = vunpack.c.l.b16 %v243
      %v643 = vunpack.c.h.b16 %v243
      %v644 = vunpack.c.l.b16 %v244
      %v645 = vunpack.c.h.b16 %v244
      %v646 = vunpack.c.l.b16 %v245
      %v647 = vunpack.c.h.b16 %v245
      %v648 = vunpack.c.l.b16 %v246
      %v649 = vunpack.c.h.b16 %v246
      %v650 = vunpack.c.l.b16 %v247
      %v651 = vunpack.c.h.b16 %v247
      %v652 = vunpack.c.l.b16 %v248
      %v653 = vunpack.c.h.b16 %v248
      %v654 = vunpack.c.l.b16 %v249
      %v655 = vunpack.c.h.b16 %v249
      %v656 = vunpack.c.l.b16 %v250
      %v657 = vunpack.c.h.b16 %v250
      %v658 = vunpack.c.l.b16 %v251
      %v659 = vunpack.c.h.b16 %v251
      %v660 = vunpack.c.l.b16 %v252
      %v661 = vunpack.c.h.b16 %v252
      %v662 = vunpack.c.l.b16 %v253
      %v663 = vunpack.c.h.b16 %v253
      %v664 = vunpack.c.l.b16 %v254
      %v665 = vunpack.c.h.b16 %v254
      %v666 = vunpack.c.l.b16 %v255
      %v667 = vunpack.c.h.b16 %v255
      %v668 = vunpack.c.l.b16 %v256
      %v669 = vunpack.c.h.b16 %v256
      %v670 = vunpack.c.l.b16 %v257
      %v671 = vunpack.c.h.b16 %v257
      %v672 = vunpack.c.l.b16 %v258
      %v673 = vunpack.c.h.b16 %v258
      %v674 = vunpack.c.l.b16 %v259
      %v675 = vunpack.c.h.b16 %v259
      %v676 = vunpack.c.l.b16 %v260
      %v677 = vunpack.c.h.b16 %v260
      %v678 = vunpack.c.l.b16 %v261
      %v679 = vunpack.c.h.b16 %v261
      %v680 = vunpack.c.l.b16 %v262
      %v681 = vunpack.c.h.b16 %v262
      %v682 = vunpack.c.l.b16 %v263
      %v683 = vunpack.c.h.b16 %v263
      %v684 = vunpack.c.l.b16 %v264
      %v685 = vunpack.c.h.b16 %v264
      %v686 = vunpack.c.l.b16 %v265
      %v687 = vunpack.c.h.b16 %v265
      %v688 = vunpack.c.l.b16 %v266
      %v689 = vunpack.c.h.b16 %v266
      %v690 = vunpack.c.l.b16 %v267
      %v691 = vunpack.c.h.b16 %v267
      %v692 = vunpack.c.l.b16 %v268
      %v693 = vunpack.c.h.b16 %v268
      %v694 = vunpack.c.l.b16 %v269
      %v695 = vunpack.c.h.b16 %v269
      %v696 = vunpack.c.l.b16 %v270
      %v697 = vunpack.c.h.b16 %v270
      %v698 = vunpack.c.l.b16 %v271
      %v699 = vunpack.c.h.b16 %v271
      %v700 = vunpack.c.l.b16 %v272
      %v701 = vunpack.c.h.b16 %v272
      %v702 = vunpack.c.l.b16 %v273
      %v703 = vunpack.c.h.b16 %v273
      %v704 = vunpack.c.l.b16 %v274
      %v705 = vunpack.c.h.b16 %v274
      %v706 = vunpack.c.l.b16 %v275
      %v707 = vunpack.c.h.b16 %v275
      %v708 = vunpack.c.l.b16 %v276
      %v709 = vunpack.c.h.b16 %v276
      %v710 = vunpack.c.l.b16 %v277
      %v711 = vunpack.c.h.b16 %v277
      %v712 = vunpack.c.l.b16 %v278
      %v713 = vunpack.c.h.b16 %v278
      %v714 = vunpack.c.l.b16 %v279
      %v715 = vunpack.c.h.b16 %v279
      %v716 = vunpack.c.l.b16 %v280
      %v717 = vunpack.c.h.b16 %v280
      %v718 = vunpack.c.l.b16 %v281
      %v719 = vunpack.c.h.b16 %v281
      %v720 = vunpack.c.l.b16 %v282
      %v721 = vunpack.c.h.b16 %v282
      %v722 = vunpack.c.l.b16 %v283
      %v723 = vunpack.c.h.b16 %v283
      %v724 = vunpack.c.l.b16 %v284
      %v725 = vunpack.c.h.b16 %v284
      %v726 = vunpack.c.l.b16 %v285
      %v727 = vunpack.c.h.b16 %v285
      %v728 = vunpack.c.l.b16 %v286
      %v729 = vunpack.c.h.b16 %v286
      %v730 = vunpack.c.l.b16 %v287
      %v731 = vunpack.c.h.b16 %v287
      %v732 = vunpack.c.l.b16 %v288
      %v733 = vunpack.c.h.b16 %v288
      %v734 = vunpack.c.l.b16 %v289
      %v735 = vunpack.c.h.b16 %v289
      %v736 = vunpack.c.l.b16 %v290
      %v737 = vunpack.c.h.b16 %v290
      %v738 = vunpack.c.l.b16 %v291
      %v739 = vunpack.c.h.b16 %v291
      %v740 = vpack.c.b16 %v628, %v612
      %v741 = vpack.c.b16 %v629, %v613
      %v742 = vpack.c.b16 %v630, %v614
      %v743 = vpack.c.b16 %v631, %v615
      %v744 = vpack.c.b16 %v632, %v616
      %v745 = vpack.c.b16 %v633, %v617
      %v746 = vpack.c.b16 %v634, %v618
      %v747 = vpack.c.b16 %v635, %v619
      %v748 = vpack.c.b16 %v636, %v620
      %v749 = vpack.c.b16 %v637, %v621
      %v750 = vpack.c.b16 %v638, %v622
      %v751 = vpack.c.b16 %v639, %v623
      %v752 = vpack.c.b16 %v640, %v624
      %v753 = vpack.c.b16 %v641, %v625
      %v754 = vpack.c.b16 %v642, %v626
      %v755 = vpack.c.b16 %v643, %v627
      %v756 = vpack.c.b16 %v660, %v644
      %v757 = vpack.c.b16 %v661, %v645
      %v758 = vpack.c.b16 %v662, %v646
      %v759 = vpack.c.b16 %v663, %v647
      %v760 = vpack.c.b16 %v664, %v648
      %v761 = vpack.c.b16 %v665, %v649
      %v762 = vpack.c.b16 %v666, %v650
      %v763 = vpack.c.b16 %v667, %v651
      %v764 = vpack.c.b16 %v668, %v652
      %v765 = vpack.c.b16 %v669, %v653
      %v766 = vpack.c.b16 %v670, %v654
      %v767 = vpack.c.b16 %v671, %v655
      %v768 = vpack.c.b16 %v672, %v656
      %v769 = vpack.c.b16 %v673, %v657
      %v770 = vpack.c.b16 %v674, %v658
      %v771 = vpack.c.b16 %v675, %v659
      %v772 = vpack.c.b16 %v692, %v676
      %v773 = vpack.c.b16 %v693, %v677
      %v774 = vpack.c.b16 %v694, %v678
      %v775 = vpack.c.b16 %v695, %v679
      %v776 = vpack.c.b16 %v696, %v680
      %v777 = vpack.c.b16 %v697, %v681
      %v778 = vpack.c.b16 %v698, %v682
      %v779 = vpack.c.b16 %v699, %v683
      %v780 = vpack.c.b16 %v700, %v684
      %v781 = vpack.c.b16 %v701, %v685
      %v782 = vpack.c.b16 %v702, %v686
      %v783 = vpack.c.b16 %v703, %v687
      %v784 = vpack.c.b16 %v704, %v688
      %v785 = vpack.c.b16 %v705, %v689
      %v786 = vpack.c.b16 %v706, %v690
      %v787 = vpack.c.b16 %v707, %v691
      %v788 = vpack.c.b16 %v724, %v708
      %v789 = vpack.c.b16 %v725, %v709
      %v790 = vpack.c.b16 %v726, %v710
      %v791 = vpack.c.b16 %v727, %v711
      %v792 = vpack.c.b16 %v728, %v712
      %v793 = vpack.c.b16 %v729, %v713
      %v794 = vpack.c.b16 %v730, %v714
      %v795 = vpack.c.b16 %v731, %v715
      %v796 = vpack.c.b16 %v732, %v716
      %v797 = vpack.c.b16 %v733, %v717
      %v798 = vpack.c.b16 %v734, %v718
      %v799 = vpack.c.b16 %v735, %v719
      %v800 = vpack.c.b16 %v736, %v720
      %v801 = vpack.c.b16 %v737, %v721
      %v802 = vpack.c.b16 %v738, %v722
      %v803 = vpack.c.b16 %v739, %v723
      %v1124 = vunpack.c.l.b16 %v292
      %v1125 = vunpack.c.l.b16 %v293
      %v1126 = vunpack.c.l.b16 %v294
      %v1127 = vunpack.c.l.b16 %v295
      %v1128 = vunpack.c.l.b16 %v296
      %v1129 = vunpack.c.l.b16 %v297
      %v1130 = vunpack.c.l.b16 %v298
      %v1131 = vunpack.c.l.b16 %v299
      %v1132 = vunpack.c.l.b16 %v300
      %v1133 = vunpack.c.l.b16 %v301
      %v1134 = vunpack.c.l.b16 %v302
      %v1135 = vunpack.c.l.b16 %v303
      %v1136 = vunpack.c.l.b16 %v304
      %v1137 = vunpack.c.l.b16 %v305
      %v1138 = vunpack.c.l.b16 %v306
      %v1139 = vunpack.c.l.b16 %v307
      %v1140 = vunpack.c.l.b16 %v308
      %v1141 = vunpack.c.l.b16 %v309
      %v1142 = vunpack.c.l.b16 %v310
      %v1143 = vunpack.c.l.b16 %v311
      %v1144 = vunpack.c.l.b16 %v312
      %v1145 = vunpack.c.l.b16 %v313
      %v1146 = vunpack.c.l.b16 %v314
      %v1147 = vunpack.c.l.b16 %v315
      %v1148 = vunpack.c.l.b16 %v316
      %v1149 = vunpack.c.l.b16 %v317
      %v1150 = vunpack.c.l.b16 %v318
      %v1151 = vunpack.c.l.b16 %v319
      %v1152 = vunpack.c.l.b16 %v320
      %v1153 = vunpack.c.l.b16 %v321
      %v1154 = vunpack.c.l.b16 %v322
      %v1155 = vunpack.c.l.b16 %v323
      %v1156 = vunpack.c.l.b16 %v324
      %v1157 = vunpack.c.l.b16 %v325
      %v1158 = vunpack.c.l.b16 %v326
      %v1159 = vunpack.c.l.b16 %v327
      %v1160 = vunpack.c.l.b16 %v328
      %v1161 = vunpack.c.l.b16 %v329
      %v1162 = vunpack.c.l.b16 %v330
      %v1163 = vunpack.c.l.b16 %v331
      %v1164 = vunpack.c.l.b16 %v332
      %v1165 = vunpack.c.l.b16 %v333
      %v1166 = vunpack.c.l.b16 %v334
      %v1167 = vunpack.c.l.b16 %v335
      %v1168 = vunpack.c.l.b16 %v336
      %v1169 = vunpack.c.l.b16 %v337
      %v1170 = vunpack.c.l.b16 %v338
      %v1171 = vunpack.c.l.b16 %v339
      %v1172 = vunpack.c.l.b16 %v340
      %v1173 = vunpack.c.l.b16 %v341
      %v1174 = vunpack.c.l.b16 %v342
      %v1175 = vunpack.c.l.b16 %v343
      %v1176 = vunpack.c.l.b16 %v344
      %v1177 = vunpack.c.l.b16 %v345
      %v1178 = vunpack.c.l.b16 %v346
      %v1179 = vunpack.c.l.b16 %v347
      %v1180 = vunpack.c.l.b16 %v348
      %v1181 = vunpack.c.l.b16 %v349
      %v1182 = vunpack.c.l.b16 %v350
      %v1183 = vunpack.c.l.b16 %v351
      %v1184 = vunpack.c.l.b16 %v352
      %v1185 = vunpack.c.l.b16 %v353
      %v1186 = vunpack.c.l.b16 %v354
      %v1187 = vunpack.c.l.b16 %v355
      %v1188 = vunpack.c.l.b16 %v356
      %v1189 = vunpack.c.l.b16 %v357
      %v1190 = vunpack.c.l.b16 %v358
      %v1191 = vunpack.c.l.b16 %v359
      %v1192 = vunpack.c.l.b16 %v360
      %v1193 = vunpack.c.l.b16 %v361
      %v1194 = vunpack.c.l.b16 %v362
      %v1195 = vunpack.c.l.b16 %v363
      %v1196 = vunpack.c.l.b16 %v364
      %v1197 = vunpack.c.l.b16 %v365
      %v1198 = vunpack.c.l.b16 %v366
      %v1199 = vunpack.c.l.b16 %v367
      %v1200 = vunpack.c.l.b16 %v368
      %v1201 = vunpack.c.l.b16 %v369
      %v1202 = vunpack.c.l.b16 %v370
      %v1203 = vunpack.c.l.b16 %v371
      %v1204 = vunpack.c.l.b16 %v372
      %v1205 = vunpack.c.l.b16 %v373
      %v1206 = vunpack.c.l.b16 %v374
      %v1207 = vunpack.c.l.b16 %v375
      %v1208 = vunpack.c.l.b16 %v376
      %v1209 = vunpack.c.l.b16 %v377
      %v1210 = vunpack.c.l.b16 %v378
      %v1211 = vunpack.c.l.b16 %v379
      %v1212 = vunpack.c.l.b16 %v380
      %v1213 = vunpack.c.l.b16 %v381
      %v1214 = vunpack.c.l.b16 %v382
      %v1215 = vunpack.c.l.b16 %v383
      %v1216 = vunpack.c.l.b16 %v384
      %v1217 = vunpack.c.l.b16 %v385
      %v1218 = vunpack.c.l.b16 %v386
      %v1219 = vunpack.c.l.b16 %v387
      %v1220 = vunpack.c.l.b16 %v388
      %v1221 = vunpack.c.l.b16 %v389
      %v1222 = vunpack.c.l.b16 %v390
      %v1223 = vunpack.c.l.b16 %v391
      %v1224 = vunpack.c.l.b16 %v392
      %v1225 = vunpack.c.l.b16 %v393
      %v1226 = vunpack.c.l.b16 %v394
      %v1227 = vunpack.c.l.b16 %v395
      %v1228 = vunpack.c.l.b16 %v396
      %v1229 = vunpack.c.l.b16 %v397
      %v1230 = vunpack.c.l.b16 %v398
      %v1231 = vunpack.c.l.b16 %v399
      %v1232 = vunpack.c.l.b16 %v400
      %v1233 = vunpack.c.l.b16 %v401
      %v1234 = vunpack.c.l.b16 %v402
      %v1235 = vunpack.c.l.b16 %v403
      %v1236 = vunpack.c.l.b16 %v404
      %v1237 = vunpack.c.l.b16 %v405
      %v1238 = vunpack.c.l.b16 %v406
      %v1239 = vunpack.c.l.b16 %v407
      %v1240 = vunpack.c.l.b16 %v408
      %v1241 = vunpack.c.l.b16 %v409
      %v1242 = vunpack.c.l.b16 %v410
      %v1243 = vunpack.c.l.b16 %v411
      %v1244 = vunpack.c.l.b16 %v412
      %v1245 = vunpack.c.l.b16 %v413
      %v1246 = vunpack.c.l.b16 %v414
      %v1247 = vunpack.c.l.b16 %v415
      %v1248 = vunpack.c.l.b16 %v416
      %v1249 = vunpack.c.l.b16 %v417
      %v1250 = vunpack.c.l.b16 %v418
      %v1251 = vunpack.c.l.b16 %v419
      %v1252 = vunpack.c.l.b16 %v420
      %v1253 = vunpack.c.l.b16 %v421
      %v1254 = vunpack.c.l.b16 %v422
      %v1255 = vunpack.c.l.b16 %v423
      %v1256 = vunpack.c.l.b16 %v424
      %v1257 = vunpack.c.l.b16 %v425
      %v1258 = vunpack.c.l.b16 %v426
      %v1259 = vunpack.c.l.b16 %v427
      %v1260 = vunpack.c.l.b16 %v428
      %v1261 = vunpack.c.l.b16 %v429
      %v1262 = vunpack.c.l.b16 %v430
      %v1263 = vunpack.c.l.b16 %v431
      %v1264 = vunpack.c.l.b16 %v432
      %v1265 = vunpack.c.l.b16 %v433
      %v1266 = vunpack.c.l.b16 %v434
      %v1267 = vunpack.c.l.b16 %v435
      %v1268 = vunpack.c.l.b16 %v436
      %v1269 = vunpack.c.l.b16 %v437
      %v1270 = vunpack.c.l.b16 %v438
      %v1271 = vunpack.c.l.b16 %v439
      %v1272 = vunpack.c.l.b16 %v440
      %v1273 = vunpack.c.l.b16 %v441
      %v1274 = vunpack.c.l.b16 %v442
      %v1275 = vunpack.c.l.b16 %v443
      %v1276 = vunpack.c.l.b16 %v444
      %v1277 = vunpack.c.l.b16 %v445
      %v1278 = vunpack.c.l.b16 %v446
      %v1279 = vunpack.c.l.b16 %v447
      %v1280 = vunpack.c.l.b16 %v448
      %v1281 = vunpack.c.l.b16 %v449
      %v1282 = vunpack.c.l.b16 %v450
      %v1283 = vunpack.c.l.b16 %v451
      %v1284 = vunpack.c.l.b16 %v452
      %v1285 = vunpack.c.l.b16 %v453
      %v1286 = vunpack.c.l.b16 %v454
      %v1287 = vunpack.c.l.b16 %v455
      %v1288 = vunpack.c.l.b16 %v456
      %v1289 = vunpack.c.l.b16 %v457
      %v1290 = vunpack.c.l.b16 %v458
      %v1291 = vunpack.c.l.b16 %v459
      %v1292 = vunpack.c.l.b16 %v460
      %v1293 = vunpack.c.l.b16 %v461
      %v1294 = vunpack.c.l.b16 %v462
      %v1295 = vunpack.c.l.b16 %v463
      %v1296 = vunpack.c.l.b16 %v464
      %v1297 = vunpack.c.l.b16 %v465
      %v1298 = vunpack.c.l.b16 %v466
      %v1299 = vunpack.c.l.b16 %v467
      %v1300 = vunpack.c.l.b16 %v468
      %v1301 = vunpack.c.l.b16 %v469
      %v1302 = vunpack.c.l.b16 %v470
      %v1303 = vunpack.c.l.b16 %v471
      %v1304 = vunpack.c.l.b16 %v472
      %v1305 = vunpack.c.l.b16 %v473
      %v1306 = vunpack.c.l.b16 %v474
      %v1307 = vunpack.c.l.b16 %v475
      %v1308 = vunpack.c.l.b16 %v476
      %v1309 = vunpack.c.l.b16 %v477
      %v1310 = vunpack.c.l.b16 %v478
      %v1311 = vunpack.c.l.b16 %v479
      %v1312 = vunpack.c.l.b16 %v480
      %v1313 = vunpack.c.l.b16 %v481
      %v1314 = vunpack.c.l.b16 %v482
      %v1315 = vunpack.c.l.b16 %v483
      %v1316 = vunpack.c.l.b16 %v484
      %v1317 = vunpack.c.l.b16 %v485
      %v1318 = vunpack.c.l.b16 %v486
      %v1319 = vunpack.c.l.b16 %v487
      %v1320 = vunpack.c.l.b16 %v488
      %v1321 = vunpack.c.l.b16 %v489
      %v1322 = vunpack.c.l.b16 %v490
      %v1323 = vunpack.c.l.b16 %v491
      %v1324 = vunpack.c.l.b16 %v492
      %v1325 = vunpack.c.l.b16 %v493
      %v1326 = vunpack.c.l.b16 %v494
      %v1327 = vunpack.c.l.b16 %v495
      %v1328 = vunpack.c.l.b16 %v496
      %v1329 = vunpack.c.l.b16 %v497
      %v1330 = vunpack.c.l.b16 %v498
      %v1331 = vunpack.c.l.b16 %v499
      %v1332 = vunpack.c.l.b16 %v500
      %v1333 = vunpack.c.l.b16 %v501
      %v1334 = vunpack.c.l.b16 %v502
      %v1335 = vunpack.c.l.b16 %v503
      %v1336 = vunpack.c.l.b16 %v504
      %v1337 = vunpack.c.l.b16 %v505
      %v1338 = vunpack.c.l.b16 %v506
      %v1339 = vunpack.c.l.b16 %v507
      %v1340 = vunpack.c.l.b16 %v508
      %v1341 = vunpack.c.l.b16 %v509
      %v1342 = vunpack.c.l.b16 %v510
      %v1343 = vunpack.c.l.b16 %v511
      %v1344 = vunpack.c.l.b16 %v512
      %v1345 = vunpack.c.l.b16 %v513
      %v1346 = vunpack.c.l.b16 %v514
      %v1347 = vunpack.c.l.b16 %v515
      %v1348 = vunpack.c.l.b16 %v516
      %v1349 = vunpack.c.l.b16 %v517
      %v1350 = vunpack.c.l.b16 %v518
      %v1351 = vunpack.c.l.b16 %v519
      %v1352 = vunpack.c.l.b16 %v520
      %v1353 = vunpack.c.l.b16 %v521
      %v1354 = vunpack.c.l.b16 %v522
      %v1355 = vunpack.c.l.b16 %v523
      %v1356 = vunpack.c.l.b16 %v524
      %v1357 = vunpack.c.l.b16 %v525
      %v1358 = vunpack.c.l.b16 %v526
      %v1359 = vunpack.c.l.b16 %v527
      %v1360 = vunpack.c.l.b16 %v528
      %v1361 = vunpack.c.l.b16 %v529
      %v1362 = vunpack.c.l.b16 %v530
      %v1363 = vunpack.c.l.b16 %v531
      %v1364 = vunpack.c.l.b16 %v532
      %v1365 = vunpack.c.l.b16 %v533
      %v1366 = vunpack.c.l.b16 %v534
      %v1367 = vunpack.c.l.b16 %v535
      %v1368 = vunpack.c.l.b16 %v536
      %v1369 = vunpack.c.l.b16 %v537
      %v1370 = vunpack.c.l.b16 %v538
      %v1371 = vunpack.c.l.b16 %v539
      %v1372 = vunpack.c.l.b16 %v540
      %v1373 = vunpack.c.l.b16 %v541
      %v1374 = vunpack.c.l.b16 %v542
      %v1375 = vunpack.c.l.b16 %v543
      %v1376 = vunpack.c.l.b16 %v544
      %v1377 = vunpack.c.l.b16 %v545
      %v1378 = vunpack.c.l.b16 %v546
      %v1379 = vunpack.c.l.b16 %v547
      %v1380 = vpack.c.b16 %v1125, %v1124
      %v1381 = vpack.c.b16 %v1127, %v1126
      %v1382 = vpack.c.b16 %v1129, %v1128
      %v1383 = vpack.c.b16 %v1131, %v1130
      %v1384 = vpack.c.b16 %v1133, %v1132
      %v1385 = vpack.c.b16 %v1135, %v1134
      %v1386 = vpack.c.b16 %v1137, %v1136
      %v1387 = vpack.c.b16 %v1139, %v1138
      %v1388 = vpack.c.b16 %v1141, %v1140
      %v1389 = vpack.c.b16 %v1143, %v1142
      %v1390 = vpack.c.b16 %v1145, %v1144
      %v1391 = vpack.c.b16 %v1147, %v1146
      %v1392 = vpack.c.b16 %v1149, %v1148
      %v1393 = vpack.c.b16 %v1151, %v1150
      %v1394 = vpack.c.b16 %v1153, %v1152
      %v1395 = vpack.c.b16 %v1155, %v1154
      %v1396 = vpack.c.b16 %v1157, %v1156
      %v1397 = vpack.c.b16 %v1159, %v1158
      %v1398 = vpack.c.b16 %v1161, %v1160
      %v1399 = vpack.c.b16 %v1163, %v1162
      %v1400 = vpack.c.b16 %v1165, %v1164
      %v1401 = vpack.c.b16 %v1167, %v1166
      %v1402 = vpack.c.b16 %v1169, %v1168
      %v1403 = vpack.c.b16 %v1171, %v1170
      %v1404 = vpack.c.b16 %v1173, %v1172
      %v1405 = vpack.c.b16 %v1175, %v1174
      %v1406 = vpack.c.b16 %v1177, %v1176
      %v1407 = vpack.c.b16 %v1179, %v1178
      %v1408 = vpack.c.b16 %v1181, %v1180
      %v1409 = vpack.c.b16 %v1183, %v1182
      %v1410 = vpack.c.b16 %v1185, %v1184
      %v1411 = vpack.c.b16 %v1187, %v1186
      %v1412 = vpack.c.b16 %v1189, %v1188
      %v1413 = vpack.c.b16 %v1191, %v1190
      %v1414 = vpack.c.b16 %v1193, %v1192
      %v1415 = vpack.c.b16 %v1195, %v1194
      %v1416 = vpack.c.b16 %v1197, %v1196
      %v1417 = vpack.c.b16 %v1199, %v1198
      %v1418 = vpack.c.b16 %v1201, %v1200
      %v1419 = vpack.c.b16 %v1203, %v1202
      %v1420 = vpack.c.b16 %v1205, %v1204
      %v1421 = vpack.c.b16 %v1207, %v1206
      %v1422 = vpack.c.b16 %v1209, %v1208
      %v1423 = vpack.c.b16 %v1211, %v1210
      %v1424 = vpack.c.b16 %v1213, %v1212
      %v1425 = vpack.c.b16 %v1215, %v1214
      %v1426 = vpack.c.b16 %v1217, %v1216
      %v1427 = vpack.c.b16 %v1219, %v1218
      %v1428 = vpack.c.b16 %v1221, %v1220
      %v1429 = vpack.c.b16 %v1223, %v1222
      %v1430 = vpack.c.b16 %v1225, %v1224
      %v1431 = vpack.c.b16 %v1227, %v1226
      %v1432 = vpack.c.b16 %v1229, %v1228
      %v1433 = vpack.c.b16 %v1231, %v1230
      %v1434 = vpack.c.b16 %v1233, %v1232
      %v1435 = vpack.c.b16 %v1235, %v1234
      %v1436 = vpack.c.b16 %v1237, %v1236
      %v1437 = vpack.c.b16 %v1239, %v1238
      %v1438 = vpack.c.b16 %v1241, %v1240
      %v1439 = vpack.c.b16 %v1243, %v1242
      %v1440 = vpack.c.b16 %v1245, %v1244
      %v1441 = vpack.c.b16 %v1247, %v1246
      %v1442 = vpack.c.b16 %v1249, %v1248
      %v1443 = vpack.c.b16 %v1251, %v1250
      %v1444 = vpack.c.b16 %v1253, %v1252
      %v1445 = vpack.c.b16 %v1255, %v1254
      %v1446 = vpack.c.b16 %v1257, %v1256
      %v1447 = vpack.c.b16 %v1259, %v1258
      %v1448 = vpack.c.b16 %v1261, %v1260
      %v1449 = vpack.c.b16 %v1263, %v1262
      %v1450 = vpack.c.b16 %v1265, %v1264
      %v1451 = vpack.c.b16 %v1267, %v1266
      %v1452 = vpack.c.b16 %v1269, %v1268
      %v1453 = vpack.c.b16 %v1271, %v1270
      %v1454 = vpack.c.b16 %v1273, %v1272
      %v1455 = vpack.c.b16 %v1275, %v1274
      %v1456 = vpack.c.b16 %v1277, %v1276
      %v1457 = vpack.c.b16 %v1279, %v1278
      %v1458 = vpack.c.b16 %v1281, %v1280
      %v1459 = vpack.c.b16 %v1283, %v1282
      %v1460 = vpack.c.b16 %v1285, %v1284
      %v1461 = vpack.c.b16 %v1287, %v1286
      %v1462 = vpack.c.b16 %v1289, %v1288
      %v1463 = vpack.c.b16 %v1291, %v1290
      %v1464 = vpack.c.b16 %v1293, %v1292
      %v1465 = vpack.c.b16 %v1295, %v1294
      %v1466 = vpack.c.b16 %v1297, %v1296
      %v1467 = vpack.c.b16 %v1299, %v1298
      %v1468 = vpack.c.b16 %v1301, %v1300
      %v1469 = vpack.c.b16 %v1303, %v1302
      %v1470 = vpack.c.b16 %v1305, %v1304
      %v1471 = vpack.c.b16 %v1307, %v1306
      %v1472 = vpack.c.b16 %v1309, %v1308
      %v1473 = vpack.c.b16 %v1311, %v1310
      %v1474 = vpack.c.b16 %v1313, %v1312
      %v1475 = vpack.c.b16 %v1315, %v1314
      %v1476 = vpack.c.b16 %v1317, %v1316
      %v1477 = vpack.c.b16 %v1319, %v1318
      %v1478 = vpack.c.b16 %v1321, %v1320
      %v1479 = vpack.c.b16 %v1323, %v1322
      %v1480 = vpack.c.b16 %v1325, %v1324
      %v1481 = vpack.c.b16 %v1327, %v1326
      %v1482 = vpack.c.b16 %v1329, %v1328
      %v1483 = vpack.c.b16 %v1331, %v1330
      %v1484 = vpack.c.b16 %v1333, %v1332
      %v1485 = vpack.c.b16 %v1335, %v1334
      %v1486 = vpack.c.b16 %v1337, %v1336
      %v1487 = vpack.c.b16 %v1339, %v1338
      %v1488 = vpack.c.b16 %v1341, %v1340
      %v1489 = vpack.c.b16 %v1343, %v1342
      %v1490 = vpack.c.b16 %v1345, %v1344
      %v1491 = vpack.c.b16 %v1347, %v1346
      %v1492 = vpack.c.b16 %v1349, %v1348
      %v1493 = vpack.c.b16 %v1351, %v1350
      %v1494 = vpack.c.b16 %v1353, %v1352
      %v1495 = vpack.c.b16 %v1355, %v1354
      %v1496 = vpack.c.b16 %v1357, %v1356
      %v1497 = vpack.c.b16 %v1359, %v1358
      %v1498 = vpack.c.b16 %v1361, %v1360
      %v1499 = vpack.c.b16 %v1363, %v1362
      %v1500 = vpack.c.b16 %v1365, %v1364
      %v1501 = vpack.c.b16 %v1367, %v1366
      %v1502 = vpack.c.b16 %v1369, %v1368
      %v1503 = vpack.c.b16 %v1371, %v1370
      %v1504 = vpack.c.b16 %v1373, %v1372
      %v1505 = vpack.c.b16 %v1375, %v1374
      %v1506 = vpack.c.b16 %v1377, %v1376
      %v1507 = vpack.c.b16 %v1379, %v1378
      %1636 = vmatprep.subr.bf16.mxu0 0
      %1637 = vmatpush1.bf16.msra.mxu0 %v1380
      %1638 = vmatprep.subr.bf16.mxu0 0
      %1639 = vmatpush1.bf16.msra.mxu0 %v1381
      %1640 = vmatprep.subr.bf16.mxu0 0
      %1641 = vmatpush1.bf16.msra.mxu0 %v1382
      %1642 = vmatprep.subr.bf16.mxu0 0
      %1643 = vmatpush1.bf16.msra.mxu0 %v1383
      %1644 = vmatprep.subr.bf16.mxu0 0
      %1645 = vmatpush1.bf16.msra.mxu0 %v1384
      %1646 = vmatprep.subr.bf16.mxu0 0
      %1647 = vmatpush1.bf16.msra.mxu0 %v1385
      %1648 = vmatprep.subr.bf16.mxu0 0
      %1649 = vmatpush1.bf16.msra.mxu0 %v1386
      %1650 = vmatprep.subr.bf16.mxu0 0
      %1651 = vmatpush1.bf16.msra.mxu0 %v1387
      %1652 = vmatprep.subr.bf16.mxu0 0
      %1653 = vmatpush1.bf16.msra.mxu0 %v1388
      %1654 = vmatprep.subr.bf16.mxu0 0
      %1655 = vmatpush1.bf16.msra.mxu0 %v1389
      %1656 = vmatprep.subr.bf16.mxu0 0
      %1657 = vmatpush1.bf16.msra.mxu0 %v1390
      %1658 = vmatprep.subr.bf16.mxu0 0
      %1659 = vmatpush1.bf16.msra.mxu0 %v1391
      %1660 = vmatprep.subr.bf16.mxu0 0
      %1661 = vmatpush1.bf16.msra.mxu0 %v1392
      %1662 = vmatprep.subr.bf16.mxu0 0
      %1663 = vmatpush1.bf16.msra.mxu0 %v1393
      %1664 = vmatprep.subr.bf16.mxu0 0
      %1665 = vmatpush1.bf16.msra.mxu0 %v1394
      %1666 = vmatprep.subr.bf16.mxu0 0
      %1667 = vmatpush1.bf16.msra.mxu0 %v1395
      %1668 = vmatprep.mubr.bf16.mxu0 %v741
      %1669 = vmatmul.mubr.bf16.gmra.mrb[0].mxu0 %v740
      %v1670 = vpop.f32.mrb[0].mxu0
      %v1671 = vadd.f32 0.0, %v1670
      %v1672 = vpop.f32.mrb[0].mxu0
      %v1673 = vpop.f32.mrb[0].mxu0
      %v1674 = vadd.f32 0.0, %v1673
      %v1675 = vpop.f32.mrb[0].mxu0
      %1676 = vmatprep.mubr.bf16.mxu0 %v757
      %1677 = vmatmul.mubr.bf16.gmra.mrb[0].mxu0 %v756
      %v1678 = vpop.f32.mrb[0].mxu0
      %v1679 = vadd.f32 0.0, %v1678
      %v1680 = vpop.f32.mrb[0].mxu0
      %v1681 = vpop.f32.mrb[0].mxu0
      %v1682 = vadd.f32 0.0, %v1681
      %v1683 = vpop.f32.mrb[0].mxu0
      %1684 = vmatprep.mubr.bf16.mxu0 %v773
      %1685 = vmatmul.mubr.bf16.gmra.mrb[0].mxu0 %v772
      %v1686 = vpop.f32.mrb[0].mxu0
      %v1687 = vadd.f32 0.0, %v1686
      %v1688 = vpop.f32.mrb[0].mxu0
      %v1689 = vpop.f32.mrb[0].mxu0
      %v1690 = vadd.f32 0.0, %v1689
      %v1691 = vpop.f32.mrb[0].mxu0
      %1692 = vmatprep.mubr.bf16.mxu0 %v789
      %1693 = vmatmul.mubr.bf16.gmra.mrb[0].mxu0 %v788
      %v1694 = vpop.f32.mrb[0].mxu0
      %v1695 = vadd.f32 0.0, %v1694
      %v1696 = vpop.f32.mrb[0].mxu0
      %v1697 = vpop.f32.mrb[0].mxu0
      %v1698 = vadd.f32 0.0, %v1697
      %v1699 = vpop.f32.mrb[0].mxu0
      %1700 = vdwg.mxu0
      %1701 = vmatprep.subr.bf16.mxu0 0
      %1702 = vmatpush1.bf16.msra.mxu0 %v1396
      %1703 = vmatprep.subr.bf16.mxu0 0
      %1704 = vmatpush1.bf16.msra.mxu0 %v1397
      %1705 = vmatprep.subr.bf16.mxu0 0
      %1706 = vmatpush1.bf16.msra.mxu0 %v1398
      %1707 = vmatprep.subr.bf16.mxu0 0
      %1708 = vmatpush1.bf16.msra.mxu0 %v1399
      %1709 = vmatprep.subr.bf16.mxu0 0
      %1710 = vmatpush1.bf16.msra.mxu0 %v1400
      %1711 = vmatprep.subr.bf16.mxu0 0
      %1712 = vmatpush1.bf16.msra.mxu0 %v1401
      %1713 = vmatprep.subr.bf16.mxu0 0
      %1714 = vmatpush1.bf16.msra.mxu0 %v1402
      %1715 = vmatprep.subr.bf16.mxu0 0
      %1716 = vmatpush1.bf16.msra.mxu0 %v1403
      %1717 = vmatprep.subr.bf16.mxu0 0
      %1718 = vmatpush1.bf16.msra.mxu0 %v1404
      %1719 = vmatprep.subr.bf16.mxu0 0
      %1720 = vmatpush1.bf16.msra.mxu0 %v1405
      %1721 = vmatprep.subr.bf16.mxu0 0
      %1722 = vmatpush1.bf16.msra.mxu0 %v1406
      %1723 = vmatprep.subr.bf16.mxu0 0
      %1724 = vmatpush1.bf16.msra.mxu0 %v1407
      %1725 = vmatprep.subr.bf16.mxu0 0
      %1726 = vmatpush1.bf16.msra.mxu0 %v1408
      %1727 = vmatprep.subr.bf16.mxu0 0
      %1728 = vmatpush1.bf16.msra.mxu0 %v1409
      %1729 = vmatprep.subr.bf16.mxu0 0
      %1730 = vmatpush1.bf16.msra.mxu0 %v1410
      %1731 = vmatprep.subr.bf16.mxu0 0
      %1732 = vmatpush1.bf16.msra.mxu0 %v1411
      %1733 = vmatprep.mubr.bf16.mxu0 %v743
      %1734 = vmatmul.mubr.bf16.gmra.mrb[0].mxu0 %v742
      %v1735 = vpop.f32.mrb[0].mxu0
      %v1736 = vadd.f32 %v1671, %v1735
      %v1737 = vpop.f32.mrb[0].mxu0
      %v1738 = vpop.f32.mrb[0].mxu0
      %v1739 = vadd.f32 %v1674, %v1738
      %v1740 = vpop.f32.mrb[0].mxu0
      %1741 = vmatprep.mubr.bf16.mxu0 %v759
      %1742 = vmatmul.mubr.bf16.gmra.mrb[0].mxu0 %v758
      %v1743 = vpop.f32.mrb[0].mxu0
      %v1744 = vadd.f32 %v1679, %v1743
      %v1745 = vpop.f32.mrb[0].mxu0
      %v1746 = vpop.f32.mrb[0].mxu0
      %v1747 = vadd.f32 %v1682, %v1746
      %v1748 = vpop.f32.mrb[0].mxu0
      %1749 = vmatprep.mubr.bf16.mxu0 %v775
      %1750 = vmatmul.mubr.bf16.gmra.mrb[0].mxu0 %v774
      %v1751 = vpop.f32.mrb[0].mxu0
      %v1752 = vadd.f32 %v1687, %v1751
      %v1753 = vpop.f32.mrb[0].mxu0
      %v1754 = vpop.f32.mrb[0].mxu0
      %v1755 = vadd.f32 %v1690, %v1754
      %v1756 = vpop.f32.mrb[0].mxu0
      %1757 = vmatprep.mubr.bf16.mxu0 %v791
      %1758 = vmatmul.mubr.bf16.gmra.mrb[0].mxu0 %v790
      %v1759 = vpop.f32.mrb[0].mxu0
      %v1760 = vadd.f32 %v1695, %v1759
      %v1761 = vpop.f32.mrb[0].mxu0
      %v1762 = vpop.f32.mrb[0].mxu0
      %v1763 = vadd.f32 %v1698, %v1762
      %v1764 = vpop.f32.mrb[0].mxu0
      %1765 = vdwg.mxu0
      %1766 = vmatprep.subr.bf16.mxu0 0
      %1767 = vmatpush1.bf16.msra.mxu0 %v1412
      %1768 = vmatprep.subr.bf16.mxu0 0
      %1769 = vmatpush1.bf16.msra.mxu0 %v1413
      %1770 = vmatprep.subr.bf16.mxu0 0
      %1771 = vmatpush1.bf16.msra.mxu0 %v1414
      %1772 = vmatprep.subr.bf16.mxu0 0
      %1773 = vmatpush1.bf16.msra.mxu0 %v1415
      %1774 = vmatprep.subr.bf16.mxu0 0
      %1775 = vmatpush1.bf16.msra.mxu0 %v1416
      %1776 = vmatprep.subr.bf16.mxu0 0
      %1777 = vmatpush1.bf16.msra.mxu0 %v1417
      %1778 = vmatprep.subr.bf16.mxu0 0
      %1779 = vmatpush1.bf16.msra.mxu0 %v1418
      %1780 = vmatprep.subr.bf16.mxu0 0
      %1781 = vmatpush1.bf16.msra.mxu0 %v1419
      %1782 = vmatprep.subr.bf16.mxu0 0
      %1783 = vmatpush1.bf16.msra.mxu0 %v1420
      %1784 = vmatprep.subr.bf16.mxu0 0
      %1785 = vmatpush1.bf16.msra.mxu0 %v1421
      %1786 = vmatprep.subr.bf16.mxu0 0
      %1787 = vmatpush1.bf16.msra.mxu0 %v1422
      %1788 = vmatprep.subr.bf16.mxu0 0
      %1789 = vmatpush1.bf16.msra.mxu0 %v1423
      %1790 = vmatprep.subr.bf16.mxu0 0
      %1791 = vmatpush1.bf16.msra.mxu0 %v1424
      %1792 = vmatprep.subr.bf16.mxu0 0
      %1793 = vmatpush1.bf16.msra.mxu0 %v1425
      %1794 = vmatprep.subr.bf16.mxu0 0
      %1795 = vmatpush1.bf16.msra.mxu0 %v1426
      %1796 = vmatprep.subr.bf16.mxu0 0
      %1797 = vmatpush1.bf16.msra.mxu0 %v1427
      %1798 = vmatprep.mubr.bf16.mxu0 %v745
      %1799 = vmatmul.mubr.bf16.gmra.mrb[0].mxu0 %v744
      %v1800 = vpop.f32.mrb[0].mxu0
      %v1801 = vadd.f32 %v1736, %v1800
      %v1802 = vpop.f32.mrb[0].mxu0
      %v1803 = vpop.f32.mrb[0].mxu0
      %v1804 = vadd.f32 %v1739, %v1803
      %v1805 = vpop.f32.mrb[0].mxu0
      %1806 = vmatprep.mubr.bf16.mxu0 %v761
      %1807 = vmatmul.mubr.bf16.gmra.mrb[0].mxu0 %v760
      %v1808 = vpop.f32.mrb[0].mxu0
      %v1809 = vadd.f32 %v1744, %v1808
      %v1810 = vpop.f32.mrb[0].mxu0
      %v1811 = vpop.f32.mrb[0].mxu0
      %v1812 = vadd.f32 %v1747, %v1811
      %v1813 = vpop.f32.mrb[0].mxu0
      %1814 = vmatprep.mubr.bf16.mxu0 %v777
      %1815 = vmatmul.mubr.bf16.gmra.mrb[0].mxu0 %v776
      %v1816 = vpop.f32.mrb[0].mxu0
      %v1817 = vadd.f32 %v1752, %v1816
      %v1818 = vpop.f32.mrb[0].mxu0
      %v1819 = vpop.f32.mrb[0].mxu0
      %v1820 = vadd.f32 %v1755, %v1819
      %v1821 = vpop.f32.mrb[0].mxu0
      %1822 = vmatprep.mubr.bf16.mxu0 %v793
      %1823 = vmatmul.mubr.bf16.gmra.mrb[0].mxu0 %v792
      %v1824 = vpop.f32.mrb[0].mxu0
      %v1825 = vadd.f32 %v1760, %v1824
      %v1826 = vpop.f32.mrb[0].mxu0
      %v1827 = vpop.f32.mrb[0].mxu0
      %v1828 = vadd.f32 %v1763, %v1827
      %v1829 = vpop.f32.mrb[0].mxu0
      %1830 = vdwg.mxu0
      %1831 = vmatprep.subr.bf16.mxu0 0
      %1832 = vmatpush1.bf16.msra.mxu0 %v1428
      %1833 = vmatprep.subr.bf16.mxu0 0
      %1834 = vmatpush1.bf16.msra.mxu0 %v1429
      %1835 = vmatprep.subr.bf16.mxu0 0
      %1836 = vmatpush1.bf16.msra.mxu0 %v1430
      %1837 = vmatprep.subr.bf16.mxu0 0
      %1838 = vmatpush1.bf16.msra.mxu0 %v1431
      %1839 = vmatprep.subr.bf16.mxu0 0
      %1840 = vmatpush1.bf16.msra.mxu0 %v1432
      %1841 = vmatprep.subr.bf16.mxu0 0
      %1842 = vmatpush1.bf16.msra.mxu0 %v1433
      %1843 = vmatprep.subr.bf16.mxu0 0
      %1844 = vmatpush1.bf16.msra.mxu0 %v1434
      %1845 = vmatprep.subr.bf16.mxu0 0
      %1846 = vmatpush1.bf16.msra.mxu0 %v1435
      %1847 = vmatprep.subr.bf16.mxu0 0
      %1848 = vmatpush1.bf16.msra.mxu0 %v1436
      %1849 = vmatprep.subr.bf16.mxu0 0
      %1850 = vmatpush1.bf16.msra.mxu0 %v1437
      %1851 = vmatprep.subr.bf16.mxu0 0
      %1852 = vmatpush1.bf16.msra.mxu0 %v1438
      %1853 = vmatprep.subr.bf16.mxu0 0
      %1854 = vmatpush1.bf16.msra.mxu0 %v1439
      %1855 = vmatprep.subr.bf16.mxu0 0
      %1856 = vmatpush1.bf16.msra.mxu0 %v1440
      %1857 = vmatprep.subr.bf16.mxu0 0
      %1858 = vmatpush1.bf16.msra.mxu0 %v1441
      %1859 = vmatprep.subr.bf16.mxu0 0
      %1860 = vmatpush1.bf16.msra.mxu0 %v1442
      %1861 = vmatprep.subr.bf16.mxu0 0
      %1862 = vmatpush1.bf16.msra.mxu0 %v1443
      %1863 = vmatprep.mubr.bf16.mxu0 %v747
      %1864 = vmatmul.mubr.bf16.gmra.mrb[0].mxu0 %v746
      %v1865 = vpop.f32.mrb[0].mxu0
      %v1866 = vadd.f32 %v1801, %v1865
      %v1867 = vpop.f32.mrb[0].mxu0
      %v1868 = vpop.f32.mrb[0].mxu0
      %v1869 = vadd.f32 %v1804, %v1868
      %v1870 = vpop.f32.mrb[0].mxu0
      %1871 = vmatprep.mubr.bf16.mxu0 %v763
      %1872 = vmatmul.mubr.bf16.gmra.mrb[0].mxu0 %v762
      %v1873 = vpop.f32.mrb[0].mxu0
      %v1874 = vadd.f32 %v1809, %v1873
      %v1875 = vpop.f32.mrb[0].mxu0
      %v1876 = vpop.f32.mrb[0].mxu0
      %v1877 = vadd.f32 %v1812, %v1876
      %v1878 = vpop.f32.mrb[0].mxu0
      %1879 = vmatprep.mubr.bf16.mxu0 %v779
      %1880 = vmatmul.mubr.bf16.gmra.mrb[0].mxu0 %v778
      %v1881 = vpop.f32.mrb[0].mxu0
      %v1882 = vadd.f32 %v1817, %v1881
      %v1883 = vpop.f32.mrb[0].mxu0
      %v1884 = vpop.f32.mrb[0].mxu0
      %v1885 = vadd.f32 %v1820, %v1884
      %v1886 = vpop.f32.mrb[0].mxu0
      %1887 = vmatprep.mubr.bf16.mxu0 %v795
      %1888 = vmatmul.mubr.bf16.gmra.mrb[0].mxu0 %v794
      %v1889 = vpop.f32.mrb[0].mxu0
      %v1890 = vadd.f32 %v1825, %v1889
      %v1891 = vpop.f32.mrb[0].mxu0
      %v1892 = vpop.f32.mrb[0].mxu0
      %v1893 = vadd.f32 %v1828, %v1892
      %v1894 = vpop.f32.mrb[0].mxu0
      %1895 = vdwg.mxu0
      %1896 = vmatprep.subr.bf16.mxu0 0
      %1897 = vmatpush1.bf16.msra.mxu0 %v1444
      %1898 = vmatprep.subr.bf16.mxu0 0
      %1899 = vmatpush1.bf16.msra.mxu0 %v1445
      %1900 = vmatprep.subr.bf16.mxu0 0
      %1901 = vmatpush1.bf16.msra.mxu0 %v1446
      %1902 = vmatprep.subr.bf16.mxu0 0
      %1903 = vmatpush1.bf16.msra.mxu0 %v1447
      %1904 = vmatprep.subr.bf16.mxu0 0
      %1905 = vmatpush1.bf16.msra.mxu0 %v1448
      %1906 = vmatprep.subr.bf16.mxu0 0
      %1907 = vmatpush1.bf16.msra.mxu0 %v1449
      %1908 = vmatprep.subr.bf16.mxu0 0
      %1909 = vmatpush1.bf16.msra.mxu0 %v1450
      %1910 = vmatprep.subr.bf16.mxu0 0
      %1911 = vmatpush1.bf16.msra.mxu0 %v1451
      %1912 = vmatprep.subr.bf16.mxu0 0
      %1913 = vmatpush1.bf16.msra.mxu0 %v1452
      %1914 = vmatprep.subr.bf16.mxu0 0
      %1915 = vmatpush1.bf16.msra.mxu0 %v1453
      %1916 = vmatprep.subr.bf16.mxu0 0
      %1917 = vmatpush1.bf16.msra.mxu0 %v1454
      %1918 = vmatprep.subr.bf16.mxu0 0
      %1919 = vmatpush1.bf16.msra.mxu0 %v1455
      %1920 = vmatprep.subr.bf16.mxu0 0
      %1921 = vmatpush1.bf16.msra.mxu0 %v1456
      %1922 = vmatprep.subr.bf16.mxu0 0
      %1923 = vmatpush1.bf16.msra.mxu0 %v1457
      %1924 = vmatprep.subr.bf16.mxu0 0
      %1925 = vmatpush1.bf16.msra.mxu0 %v1458
      %1926 = vmatprep.subr.bf16.mxu0 0
      %1927 = vmatpush1.bf16.msra.mxu0 %v1459
      %1928 = vmatprep.mubr.bf16.mxu0 %v749
      %1929 = vmatmul.mubr.bf16.gmra.mrb[0].mxu0 %v748
      %v1930 = vpop.f32.mrb[0].mxu0
      %v1931 = vadd.f32 %v1866, %v1930
      %v1932 = vpop.f32.mrb[0].mxu0
      %v1933 = vpop.f32.mrb[0].mxu0
      %v1934 = vadd.f32 %v1869, %v1933
      %v1935 = vpop.f32.mrb[0].mxu0
      %1936 = vmatprep.mubr.bf16.mxu0 %v765
      %1937 = vmatmul.mubr.bf16.gmra.mrb[0].mxu0 %v764
      %v1938 = vpop.f32.mrb[0].mxu0
      %v1939 = vadd.f32 %v1874, %v1938
      %v1940 = vpop.f32.mrb[0].mxu0
      %v1941 = vpop.f32.mrb[0].mxu0
      %v1942 = vadd.f32 %v1877, %v1941
      %v1943 = vpop.f32.mrb[0].mxu0
      %1944 = vmatprep.mubr.bf16.mxu0 %v781
      %1945 = vmatmul.mubr.bf16.gmra.mrb[0].mxu0 %v780
      %v1946 = vpop.f32.mrb[0].mxu0
      %v1947 = vadd.f32 %v1882, %v1946
      %v1948 = vpop.f32.mrb[0].mxu0
      %v1949 = vpop.f32.mrb[0].mxu0
      %v1950 = vadd.f32 %v1885, %v1949
      %v1951 = vpop.f32.mrb[0].mxu0
      %1952 = vmatprep.mubr.bf16.mxu0 %v797
      %1953 = vmatmul.mubr.bf16.gmra.mrb[0].mxu0 %v796
      %v1954 = vpop.f32.mrb[0].mxu0
      %v1955 = vadd.f32 %v1890, %v1954
      %v1956 = vpop.f32.mrb[0].mxu0
      %v1957 = vpop.f32.mrb[0].mxu0
      %v1958 = vadd.f32 %v1893, %v1957
      %v1959 = vpop.f32.mrb[0].mxu0
      %1960 = vdwg.mxu0
      %1961 = vmatprep.subr.bf16.mxu0 0
      %1962 = vmatpush1.bf16.msra.mxu0 %v1460
      %1963 = vmatprep.subr.bf16.mxu0 0
      %1964 = vmatpush1.bf16.msra.mxu0 %v1461
      %1965 = vmatprep.subr.bf16.mxu0 0
      %1966 = vmatpush1.bf16.msra.mxu0 %v1462
      %1967 = vmatprep.subr.bf16.mxu0 0
      %1968 = vmatpush1.bf16.msra.mxu0 %v1463
      %1969 = vmatprep.subr.bf16.mxu0 0
      %1970 = vmatpush1.bf16.msra.mxu0 %v1464
      %1971 = vmatprep.subr.bf16.mxu0 0
      %1972 = vmatpush1.bf16.msra.mxu0 %v1465
      %1973 = vmatprep.subr.bf16.mxu0 0
      %1974 = vmatpush1.bf16.msra.mxu0 %v1466
      %1975 = vmatprep.subr.bf16.mxu0 0
      %1976 = vmatpush1.bf16.msra.mxu0 %v1467
      %1977 = vmatprep.subr.bf16.mxu0 0
      %1978 = vmatpush1.bf16.msra.mxu0 %v1468
      %1979 = vmatprep.subr.bf16.mxu0 0
      %1980 = vmatpush1.bf16.msra.mxu0 %v1469
      %1981 = vmatprep.subr.bf16.mxu0 0
      %1982 = vmatpush1.bf16.msra.mxu0 %v1470
      %1983 = vmatprep.subr.bf16.mxu0 0
      %1984 = vmatpush1.bf16.msra.mxu0 %v1471
      %1985 = vmatprep.subr.bf16.mxu0 0
      %1986 = vmatpush1.bf16.msra.mxu0 %v1472
      %1987 = vmatprep.subr.bf16.mxu0 0
      %1988 = vmatpush1.bf16.msra.mxu0 %v1473
      %1989 = vmatprep.subr.bf16.mxu0 0
      %1990 = vmatpush1.bf16.msra.mxu0 %v1474
      %1991 = vmatprep.subr.bf16.mxu0 0
      %1992 = vmatpush1.bf16.msra.mxu0 %v1475
      %1993 = vmatprep.mubr.bf16.mxu0 %v751
      %1994 = vmatmul.mubr.bf16.gmra.mrb[0].mxu0 %v750
      %v1995 = vpop.f32.mrb[0].mxu0
      %v1996 = vadd.f32 %v1931, %v1995
      %v1997 = vpop.f32.mrb[0].mxu0
      %v1998 = vpop.f32.mrb[0].mxu0
      %v1999 = vadd.f32 %v1934, %v1998
      %v2000 = vpop.f32.mrb[0].mxu0
      %2001 = vmatprep.mubr.bf16.mxu0 %v767
      %2002 = vmatmul.mubr.bf16.gmra.mrb[0].mxu0 %v766
      %v2003 = vpop.f32.mrb[0].mxu0
      %v2004 = vadd.f32 %v1939, %v2003
      %v2005 = vpop.f32.mrb[0].mxu0
      %v2006 = vpop.f32.mrb[0].mxu0
      %v2007 = vadd.f32 %v1942, %v2006
      %v2008 = vpop.f32.mrb[0].mxu0
      %2009 = vmatprep.mubr.bf16.mxu0 %v783
      %2010 = vmatmul.mubr.bf16.gmra.mrb[0].mxu0 %v782
      %v2011 = vpop.f32.mrb[0].mxu0
      %v2012 = vadd.f32 %v1947, %v2011
      %v2013 = vpop.f32.mrb[0].mxu0
      %v2014 = vpop.f32.mrb[0].mxu0
      %v2015 = vadd.f32 %v1950, %v2014
      %v2016 = vpop.f32.mrb[0].mxu0
      %2017 = vmatprep.mubr.bf16.mxu0 %v799
      %2018 = vmatmul.mubr.bf16.gmra.mrb[0].mxu0 %v798
      %v2019 = vpop.f32.mrb[0].mxu0
      %v2020 = vadd.f32 %v1955, %v2019
      %v2021 = vpop.f32.mrb[0].mxu0
      %v2022 = vpop.f32.mrb[0].mxu0
      %v2023 = vadd.f32 %v1958, %v2022
      %v2024 = vpop.f32.mrb[0].mxu0
      %2025 = vdwg.mxu0
      %2026 = vmatprep.subr.bf16.mxu0 0
      %2027 = vmatpush1.bf16.msra.mxu0 %v1476
      %2028 = vmatprep.subr.bf16.mxu0 0
      %2029 = vmatpush1.bf16.msra.mxu0 %v1477
      %2030 = vmatprep.subr.bf16.mxu0 0
      %2031 = vmatpush1.bf16.msra.mxu0 %v1478
      %2032 = vmatprep.subr.bf16.mxu0 0
      %2033 = vmatpush1.bf16.msra.mxu0 %v1479
      %2034 = vmatprep.subr.bf16.mxu0 0
      %2035 = vmatpush1.bf16.msra.mxu0 %v1480
      %2036 = vmatprep.subr.bf16.mxu0 0
      %2037 = vmatpush1.bf16.msra.mxu0 %v1481
      %2038 = vmatprep.subr.bf16.mxu0 0
      %2039 = vmatpush1.bf16.msra.mxu0 %v1482
      %2040 = vmatprep.subr.bf16.mxu0 0
      %2041 = vmatpush1.bf16.msra.mxu0 %v1483
      %2042 = vmatprep.subr.bf16.mxu0 0
      %2043 = vmatpush1.bf16.msra.mxu0 %v1484
      %2044 = vmatprep.subr.bf16.mxu0 0
      %2045 = vmatpush1.bf16.msra.mxu0 %v1485
      %2046 = vmatprep.subr.bf16.mxu0 0
      %2047 = vmatpush1.bf16.msra.mxu0 %v1486
      %2048 = vmatprep.subr.bf16.mxu0 0
      %2049 = vmatpush1.bf16.msra.mxu0 %v1487
      %2050 = vmatprep.subr.bf16.mxu0 0
      %2051 = vmatpush1.bf16.msra.mxu0 %v1488
      %2052 = vmatprep.subr.bf16.mxu0 0
      %2053 = vmatpush1.bf16.msra.mxu0 %v1489
      %2054 = vmatprep.subr.bf16.mxu0 0
      %2055 = vmatpush1.bf16.msra.mxu0 %v1490
      %2056 = vmatprep.subr.bf16.mxu0 0
      %2057 = vmatpush1.bf16.msra.mxu0 %v1491
      %2058 = vmatprep.mubr.bf16.mxu0 %v753
      %2059 = vmatmul.mubr.bf16.gmra.mrb[0].mxu0 %v752
      %v2060 = vpop.f32.mrb[0].mxu0
      %v2061 = vadd.f32 %v1996, %v2060
      %v2062 = vpop.f32.mrb[0].mxu0
      %v2063 = vpop.f32.mrb[0].mxu0
      %v2064 = vadd.f32 %v1999, %v2063
      %v2065 = vpop.f32.mrb[0].mxu0
      %2066 = vmatprep.mubr.bf16.mxu0 %v769
      %2067 = vmatmul.mubr.bf16.gmra.mrb[0].mxu0 %v768
      %v2068 = vpop.f32.mrb[0].mxu0
      %v2069 = vadd.f32 %v2004, %v2068
      %v2070 = vpop.f32.mrb[0].mxu0
      %v2071 = vpop.f32.mrb[0].mxu0
      %v2072 = vadd.f32 %v2007, %v2071
      %v2073 = vpop.f32.mrb[0].mxu0
      %2074 = vmatprep.mubr.bf16.mxu0 %v785
      %2075 = vmatmul.mubr.bf16.gmra.mrb[0].mxu0 %v784
      %v2076 = vpop.f32.mrb[0].mxu0
      %v2077 = vadd.f32 %v2012, %v2076
      %v2078 = vpop.f32.mrb[0].mxu0
      %v2079 = vpop.f32.mrb[0].mxu0
      %v2080 = vadd.f32 %v2015, %v2079
      %v2081 = vpop.f32.mrb[0].mxu0
      %2082 = vmatprep.mubr.bf16.mxu0 %v801
      %2083 = vmatmul.mubr.bf16.gmra.mrb[0].mxu0 %v800
      %v2084 = vpop.f32.mrb[0].mxu0
      %v2085 = vadd.f32 %v2020, %v2084
      %v2086 = vpop.f32.mrb[0].mxu0
      %v2087 = vpop.f32.mrb[0].mxu0
      %v2088 = vadd.f32 %v2023, %v2087
      %v2089 = vpop.f32.mrb[0].mxu0
      %2090 = vdwg.mxu0
      %2091 = vmatprep.subr.bf16.mxu0 0
      %2092 = vmatpush1.bf16.msra.mxu0 %v1492
      %2093 = vmatprep.subr.bf16.mxu0 0
      %2094 = vmatpush1.bf16.msra.mxu0 %v1493
      %2095 = vmatprep.subr.bf16.mxu0 0
      %2096 = vmatpush1.bf16.msra.mxu0 %v1494
      %2097 = vmatprep.subr.bf16.mxu0 0
      %2098 = vmatpush1.bf16.msra.mxu0 %v1495
      %2099 = vmatprep.subr.bf16.mxu0 0
      %2100 = vmatpush1.bf16.msra.mxu0 %v1496
      %2101 = vmatprep.subr.bf16.mxu0 0
      %2102 = vmatpush1.bf16.msra.mxu0 %v1497
      %2103 = vmatprep.subr.bf16.mxu0 0
      %2104 = vmatpush1.bf16.msra.mxu0 %v1498
      %2105 = vmatprep.subr.bf16.mxu0 0
      %2106 = vmatpush1.bf16.msra.mxu0 %v1499
      %2107 = vmatprep.subr.bf16.mxu0 0
      %2108 = vmatpush1.bf16.msra.mxu0 %v1500
      %2109 = vmatprep.subr.bf16.mxu0 0
      %2110 = vmatpush1.bf16.msra.mxu0 %v1501
      %2111 = vmatprep.subr.bf16.mxu0 0
      %2112 = vmatpush1.bf16.msra.mxu0 %v1502
      %2113 = vmatprep.subr.bf16.mxu0 0
      %2114 = vmatpush1.bf16.msra.mxu0 %v1503
      %2115 = vmatprep.subr.bf16.mxu0 0
      %2116 = vmatpush1.bf16.msra.mxu0 %v1504
      %2117 = vmatprep.subr.bf16.mxu0 0
      %2118 = vmatpush1.bf16.msra.mxu0 %v1505
      %2119 = vmatprep.subr.bf16.mxu0 0
      %2120 = vmatpush1.bf16.msra.mxu0 %v1506
      %2121 = vmatprep.subr.bf16.mxu0 0
      %2122 = vmatpush1.bf16.msra.mxu0 %v1507
      %2123 = vmatprep.mubr.bf16.mxu0 %v755
      %2124 = vmatmul.mubr.bf16.gmra.mrb[0].mxu0 %v754
      %v2125 = vpop.f32.mrb[0].mxu0
      %v2126 = vadd.f32 %v2061, %v2125
      %v2127 = vpop.f32.mrb[0].mxu0
      %v2128 = vpop.f32.mrb[0].mxu0
      %v2129 = vadd.f32 %v2064, %v2128
      %v2130 = vpop.f32.mrb[0].mxu0
      %2131 = vmatprep.mubr.bf16.mxu0 %v771
      %2132 = vmatmul.mubr.bf16.gmra.mrb[0].mxu0 %v770
      %v2133 = vpop.f32.mrb[0].mxu0
      %v2134 = vadd.f32 %v2069, %v2133
      %v2135 = vpop.f32.mrb[0].mxu0
      %v2136 = vpop.f32.mrb[0].mxu0
      %v2137 = vadd.f32 %v2072, %v2136
      %v2138 = vpop.f32.mrb[0].mxu0
      %2139 = vmatprep.mubr.bf16.mxu0 %v787
      %2140 = vmatmul.mubr.bf16.gmra.mrb[0].mxu0 %v786
      %v2141 = vpop.f32.mrb[0].mxu0
      %v2142 = vadd.f32 %v2077, %v2141
      %v2143 = vpop.f32.mrb[0].mxu0
      %v2144 = vpop.f32.mrb[0].mxu0
      %v2145 = vadd.f32 %v2080, %v2144
      %v2146 = vpop.f32.mrb[0].mxu0
      %2147 = vmatprep.mubr.bf16.mxu0 %v803
      %2148 = vmatmul.mubr.bf16.gmra.mrb[0].mxu0 %v802
      %v2149 = vpop.f32.mrb[0].mxu0
      %v2150 = vadd.f32 %v2085, %v2149
      %v2151 = vpop.f32.mrb[0].mxu0
      %v2152 = vpop.f32.mrb[0].mxu0
      %v2153 = vadd.f32 %v2088, %v2152
      %v2154 = vpop.f32.mrb[0].mxu0
      %2155 = vdwg.mxu0
      %p2156 = scmp.eq.s32.totalorder %s19, 0
      // Predicated region
      $region33: #{tpu_custom_call.1} parent=31 // pred_check
        %p2157 = pneg %p2156
      $region34: #{tpu_custom_call.1} parent=31 // pred_check_branch
        %2159 = sbr.rel (%p2157) target = $region36
      $region35: #{tpu_custom_call.1} parent=31 // pred_region
        %vm2160 = vcmask 130048
        %2161 = vst.msk [vmem:[%s225] sm:$0xff] %vm2160, %v2126
        %2162 = vst.msk [vmem:[%s225 + $0x8] sm:$0xff] %vm2160, %v2129
        %2163 = vst.msk [vmem:[%s225 + $0x10] sm:$0xff] %vm2160, %v2134
        %2164 = vst.msk [vmem:[%s225 + $0x18] sm:$0xff] %vm2160, %v2137
        %2165 = vst.msk [vmem:[%s225 + $0x20] sm:$0xff] %vm2160, %v2142
        %2166 = vst.msk [vmem:[%s225 + $0x28] sm:$0xff] %vm2160, %v2145
        %2167 = vst.msk [vmem:[%s225 + $0x30] sm:$0xff] %vm2160, %v2150
        %2168 = vst.msk [vmem:[%s225 + $0x38] sm:$0xff] %vm2160, %v2153
      $region36: #{tpu_custom_call.1} parent=31 // pred_fallthru
        _
      %p2169 = scmp.gt.s32.totalorder %s19, 0
      // Predicated region
      $region37: #{tpu_custom_call.1} parent=31 // pred_check
        %p2170 = pneg %p2169
      $region38: #{tpu_custom_call.1} parent=31 // pred_check_branch
        %2172 = sbr.rel (%p2170) target = $region40
      $region39: #{tpu_custom_call.1} parent=31 // pred_region
        %v2173 = vld [vmem:[%s225] sm:$0xff]
        %v2174 = vld [vmem:[%s225 + $0x8] sm:$0xff]
        %v2175 = vld [vmem:[%s225 + $0x10] sm:$0xff]
        %v2176 = vld [vmem:[%s225 + $0x18] sm:$0xff]
        %v2177 = vld [vmem:[%s225 + $0x20] sm:$0xff]
        %v2178 = vld [vmem:[%s225 + $0x28] sm:$0xff]
        %v2179 = vld [vmem:[%s225 + $0x30] sm:$0xff]
        %v2180 = vld [vmem:[%s225 + $0x38] sm:$0xff]
        %v2181 = vadd.f32 %v2173, %v2126
        %v2182 = vadd.f32 %v2174, %v2129
        %v2183 = vadd.f32 %v2175, %v2134
        %v2184 = vadd.f32 %v2176, %v2137
        %v2185 = vadd.f32 %v2177, %v2142
        %v2186 = vadd.f32 %v2178, %v2145
        %v2187 = vadd.f32 %v2179, %v2150
        %v2188 = vadd.f32 %v2180, %v2153
        %vm2189 = vcmask 130048
        %2190 = vst.msk [vmem:[%s225] sm:$0xff] %vm2189, %v2181
        %2191 = vst.msk [vmem:[%s225 + $0x8] sm:$0xff] %vm2189, %v2182
        %2192 = vst.msk [vmem:[%s225 + $0x10] sm:$0xff] %vm2189, %v2183
        %2193 = vst.msk [vmem:[%s225 + $0x18] sm:$0xff] %vm2189, %v2184
        %2194 = vst.msk [vmem:[%s225 + $0x20] sm:$0xff] %vm2189, %v2185
        %2195 = vst.msk [vmem:[%s225 + $0x28] sm:$0xff] %vm2189, %v2186
        %2196 = vst.msk [vmem:[%s225 + $0x30] sm:$0xff] %vm2189, %v2187
        %2197 = vst.msk [vmem:[%s225 + $0x38] sm:$0xff] %vm2189, %v2188
      $region40: #{tpu_custom_call.1} parent=31 // pred_fallthru
        _
      // Predicated region
      $region41: #{tpu_custom_call.1} parent=31 // pred_check
        %p2198 = pneg %p2156
      $region42: #{tpu_custom_call.1} parent=31 // pred_check_branch
        %2200 = sbr.rel (%p2198) target = $region44
      $region43: #{tpu_custom_call.1} parent=31 // pred_region
        %v2201 = vld [vmem:[%s225] sm:$0xff]
        %v2202 = vld [vmem:[%s225 + $0x8] sm:$0xff]
        %v2203 = vld [vmem:[%s225 + $0x10] sm:$0xff]
        %v2204 = vld [vmem:[%s225 + $0x18] sm:$0xff]
        %v2205 = vld [vmem:[%s225 + $0x20] sm:$0xff]
        %v2206 = vld [vmem:[%s225 + $0x28] sm:$0xff]
        %v2207 = vld [vmem:[%s225 + $0x30] sm:$0xff]
        %v2208 = vld [vmem:[%s225 + $0x38] sm:$0xff]
        %v2209 = vld [vmem:[%s2] sm:$0x1]
        %v2211 = vlaneseq
        %v2212 = vshrl.u32 %v2211, 7
        %v2213 = vsub.s32 0, %v2212
        %v2214 = vrot.slane %v2209, %v2213
        %v2216 = vadd.f32 %v2201, %v2214
        %v2217 = vadd.f32 %v2202, %v2214
        %v2218 = vadd.f32 %v2203, %v2214
        %v2219 = vadd.f32 %v2204, %v2214
        %v2220 = vadd.f32 %v2205, %v2214
        %v2221 = vadd.f32 %v2206, %v2214
        %v2222 = vadd.f32 %v2207, %v2214
        %v2223 = vadd.f32 %v2208, %v2214
        %vm2224 = vcmask 130048
        %v2225 = vsel %vm2224, %v2216, -inf
        %2226 = vmax.xlane.f32.xlu0 %v2225
        %v2227 = vpop.xlane.xlu0 %2226
        %v2228 = vsel %vm2224, %v2217, -inf
        %2229 = vmax.xlane.f32.xlu0 %v2228
        %v2230 = vpop.xlane.xlu0 %2229
        %v2231 = vsel %vm2224, %v2218, -inf
        %2232 = vmax.xlane.f32.xlu0 %v2231
        %v2233 = vpop.xlane.xlu0 %2232
        %v2234 = vsel %vm2224, %v2219, -inf
        %2235 = vmax.xlane.f32.xlu0 %v2234
        %v2236 = vpop.xlane.xlu0 %2235
        %v2237 = vsel %vm2224, %v2220, -inf
        %2238 = vmax.xlane.f32.xlu0 %v2237
        %v2239 = vpop.xlane.xlu0 %2238
        %v2240 = vsel %vm2224, %v2221, -inf
        %2241 = vmax.xlane.f32.xlu0 %v2240
        %v2242 = vpop.xlane.xlu0 %2241
        %v2243 = vsel %vm2224, %v2222, -inf
        %2244 = vmax.xlane.f32.xlu0 %v2243
        %v2245 = vpop.xlane.xlu0 %2244
        %v2246 = vsel %vm2224, %v2223, -inf
        %2247 = vmax.xlane.f32.xlu0 %v2246
        %v2248 = vpop.xlane.xlu0 %2247
        %v2249 = vsub.f32 %v2216, %v2227
        %v2250 = vsub.f32 %v2217, %v2230
        %v2251 = vsub.f32 %v2218, %v2233
        %v2252 = vsub.f32 %v2219, %v2236
        %v2253 = vsub.f32 %v2220, %v2239
        %v2254 = vsub.f32 %v2221, %v2242
        %v2255 = vsub.f32 %v2222, %v2245
        %v2256 = vsub.f32 %v2223, %v2248
        %v2257 = vmul.f32 %v2249, 1.442695
        %v2258 = vpow.pop %v2257
        %v2259 = vmul.f32 %v2250, 1.442695
        %v2260 = vpow.pop %v2259
        %v2261 = vmul.f32 %v2251, 1.442695
        %v2262 = vpow.pop %v2261
        %v2263 = vmul.f32 %v2252, 1.442695
        %v2264 = vpow.pop %v2263
        %v2265 = vmul.f32 %v2253, 1.442695
        %v2266 = vpow.pop %v2265
        %v2267 = vmul.f32 %v2254, 1.442695
        %v2268 = vpow.pop %v2267
        %v2269 = vmul.f32 %v2255, 1.442695
        %v2270 = vpow.pop %v2269
        %v2271 = vmul.f32 %v2256, 1.442695
        %v2272 = vpow.pop %v2271
        %v2273 = vsel %vm2224, %v2258, 0.0
        %2274 = vadd.xlane.f32.xlu0 %v2273
        %v2275 = vpop.xlane.xlu0 %2274
        %v2276 = vsel %vm2224, %v2260, 0.0
        %2277 = vadd.xlane.f32.xlu0 %v2276
        %v2278 = vpop.xlane.xlu0 %2277
        %v2279 = vsel %vm2224, %v2262, 0.0
        %2280 = vadd.xlane.f32.xlu0 %v2279
        %v2281 = vpop.xlane.xlu0 %2280
        %v2282 = vsel %vm2224, %v2264, 0.0
        %2283 = vadd.xlane.f32.xlu0 %v2282
        %v2284 = vpop.xlane.xlu0 %2283
        %v2285 = vsel %vm2224, %v2266, 0.0
        %2286 = vadd.xlane.f32.xlu0 %v2285
        %v2287 = vpop.xlane.xlu0 %2286
        %v2288 = vsel %vm2224, %v2268, 0.0
        %2289 = vadd.xlane.f32.xlu0 %v2288
        %v2290 = vpop.xlane.xlu0 %2289
        %v2291 = vsel %vm2224, %v2270, 0.0
        %2292 = vadd.xlane.f32.xlu0 %v2291
        %v2293 = vpop.xlane.xlu0 %2292
        %v2294 = vsel %vm2224, %v2272, 0.0
        %2295 = vadd.xlane.f32.xlu0 %v2294
        %v2296 = vpop.xlane.xlu0 %2295
        %v2297 = vlog2.pop %v2275
        %v2298 = vmul.f32 %v2297, 0.6931472
        %v2299 = vlog2.pop %v2278
        %v2300 = vmul.f32 %v2299, 0.6931472
        %v2301 = vlog2.pop %v2281
        %v2302 = vmul.f32 %v2301, 0.6931472
        %v2303 = vlog2.pop %v2284
        %v2304 = vmul.f32 %v2303, 0.6931472
        %v2305 = vlog2.pop %v2287
        %v2306 = vmul.f32 %v2305, 0.6931472
        %v2307 = vlog2.pop %v2290
        %v2308 = vmul.f32 %v2307, 0.6931472
        %v2309 = vlog2.pop %v2293
        %v2310 = vmul.f32 %v2309, 0.6931472
        %v2311 = vlog2.pop %v2296
        %v2312 = vmul.f32 %v2311, 0.6931472
        %v2313 = vsub.f32 %v2249, %v2298
        %v2314 = vsub.f32 %v2250, %v2300
        %v2315 = vsub.f32 %v2251, %v2302
        %v2316 = vsub.f32 %v2252, %v2304
        %v2317 = vsub.f32 %v2253, %v2306
        %v2318 = vsub.f32 %v2254, %v2308
        %v2319 = vsub.f32 %v2255, %v2310
        %v2320 = vsub.f32 %v2256, %v2312
        %2321 = vst.msk [vmem:[%s225] sm:$0xff] %vm2224, %v2313
        %2322 = vst.msk [vmem:[%s225 + $0x8] sm:$0xff] %vm2224, %v2314
        %2323 = vst.msk [vmem:[%s225 + $0x10] sm:$0xff] %vm2224, %v2315
        %2324 = vst.msk [vmem:[%s225 + $0x18] sm:$0xff] %vm2224, %v2316
        %2325 = vst.msk [vmem:[%s225 + $0x20] sm:$0xff] %vm2224, %v2317
        %2326 = vst.msk [vmem:[%s225 + $0x28] sm:$0xff] %vm2224, %v2318
        %2327 = vst.msk [vmem:[%s225 + $0x30] sm:$0xff] %vm2224, %v2319
        %2328 = vst.msk [vmem:[%s225 + $0x38] sm:$0xff] %vm2224, %v2320
      $region44: #{tpu_custom_call.1} parent=31 // pred_fallthru
        _
      %s2329 = smul.u32 8, %s18
      %p2330 = scmp.lt.s32.totalorder %s2329, 15
      %s2331 = scalar_select %p2330, %s2329, 15
      %s2332 = smul.addr %s2331, 8
      %s2333 = scalar_lea.vmem %s3, %s2332
      // Predicated region
      $region45: #{tpu_custom_call.1} parent=31 // pred_check
        %p2334 = pneg %p119
      $region46: #{tpu_custom_call.1} parent=31 // pred_check_branch
        %2336 = sbr.rel (%p2334) target = $region48
      $region47: #{tpu_custom_call.1} parent=31 // pred_region
        %s2337 = smul.u32 8, %s18
      $region48: #{tpu_custom_call.1} parent=31 // pred_fallthru
        _
    $region32: #{tpu_custom_call.1} parent=5 // pred_fallthru
      _
    %p2338 = scmp.le.s32.totalorder 2, %s9
    // Predicated region
    $region49: #{tpu_custom_call.1} parent=5 // pred_check
      %p2339 = pneg %p2338
    $region50: #{tpu_custom_call.1} parent=5 // pred_check_branch
      %2341 = sbr.rel (%p2339) target = $region52
    $region51: #{tpu_custom_call.1} parent=5 // pred_region
      %s2342 = ssub.s32 %s9, 2
      // Predicated region
      $region53: #{tpu_custom_call.1} parent=51 // pred_check
        %p2343 = pneg %p125
      $region54: #{tpu_custom_call.1} parent=51 // pred_check_branch
        %2345 = sbr.rel (%p2343) target = $region56
      $region55: #{tpu_custom_call.1} parent=51 // pred_region
        %s2346 = smul.u32 8, %s20
        %p2347 = scmp.lt.s32.totalorder %s2346, 15
        %s2348 = scalar_select %p2347, %s2346, 15
        %s2349 = smul.addr %s2348, 8
        %s2350 = scalar_lea.vmem %s3, %s2349
      $region56: #{tpu_custom_call.1} parent=51 // pred_fallthru
        _
    $region52: #{tpu_custom_call.1} parent=5 // pred_fallthru
      _
  $region6: #{tpu_custom_call.1} parent=0 // loop_footer
    %s13 = sadd.s32 1, %s9
  $region7: #{tpu_custom_call.1} parent=0 // loop_footer_branch
    %8 = sbr.rel target = $region3
  $region8: #{tpu_custom_call.1} parent=0 // loop_exit
    _

</llo_original>
